<compile_context>
chip_gen: v7x
topology: tpu7x:2x2x1
jax: 0.10.0
libtpu: 0.0.40
codegen_flags: <defaults>
</compile_context>

<pallas_src>
import functools
import math

import jax
import jax.numpy as jnp
from jax.experimental import pallas as pl
from jax.experimental.pallas import tpu as pltpu


# --------------------------------------------------------------------------- utils
def _round_up(n, m):
    return ((n + m - 1) // m) * m


def _largest_tile(n, prefs):
    for p in prefs:
        if n % p == 0:
            return p
    return n


def _vmem_limit_bytes():
    """Per-generation VMEM budget (leave headroom for compiler scratch)."""
    cap = 128 * 1024 * 1024
    try:
        info = pltpu.get_tpu_info()
        cap = int(getattr(info, "vmem_capacity_bytes", cap))
    except Exception:
        pass
    return int(min(64 * 1024 * 1024, (cap * 5) // 8))   # 40 MiB on v7x, 64 MiB on v5e/v6e


def _seq_plan(S, B):
    """Pick padded sequence length and q/kv tile sizes (always 8/128-friendly)."""
    if S <= 256:
        s_pad = _round_up(S, 8)
        tq = tk = s_pad
    elif S <= 1024:
        s_pad = _round_up(S, 128)
        tq = tk = 128
    else:
        s_pad = _round_up(S, 256)
        tq, tk = 128, 256                    # tk capped at 256 (v5e logits/probs in vregs)
    # Megacore: guarantee >=2 parallel blocks on the (B, nq) axes when B == 1.
    if B == 1 and s_pad // tq == 1 and s_pad % 16 == 0:
        tq = s_pad // 2
    return s_pad, tq, tk


# ------------------------------------------------------------- parameter / input prep
def _prepare_params(params, D, Dp):
    wq, bq, wk, bk, wv, bv, wm, bm, gamma, beta = params
    scale = 1.0 / math.sqrt(float(D))
    pad_w = lambda w: jnp.pad(w.T.astype(jnp.float32), ((0, Dp - D), (0, Dp - D)))
    pad_v = lambda v: jnp.pad(v.astype(jnp.float32), (0, Dp - D))
    # One (Dp, 3Dp) bf16 weight; 1/sqrt(D) folded into the Q slice.  Padded output
    # columns are zero, so padded lanes of q/k/v/out stay exactly zero.
    w_qkv = jnp.concatenate([pad_w(wq) * scale, pad_w(wk), pad_w(wv)],
                            axis=1).astype(jnp.bfloat16)
    b_qkv = jnp.concatenate([pad_v(bq) * scale, pad_v(bk), pad_v(bv)]).reshape(1, 3 * Dp)
    wm_p = pad_w(wm).astype(jnp.bfloat16)
    bm_p = pad_v(bm).reshape(1, Dp)
    gamma_p = pad_v(gamma).reshape(1, Dp)   # padded gamma/beta = 0 -> padded output lanes = 0
    beta_p = pad_v(beta).reshape(1, Dp)
    return w_qkv, b_qkv, wm_p, bm_p, gamma_p, beta_p


def _pad_inputs(x, mask, S_pad, Dp):
    B, S, D = x.shape
    x_p = jnp.pad(x.astype(jnp.float32), ((0, 0), (0, S_pad - S), (0, Dp - D)))
    mask_p = jnp.pad(mask.astype(jnp.float32), ((0, 0), (0, S_pad - S), (0, S_pad - S)))
    if S_pad > S:
        key_valid = jnp.arange(S_pad) < S          # padded keys contribute exactly 0
        mask_p = jnp.where(key_valid[None, None, :], mask_p, jnp.float32(-1e9))
    return x_p, mask_p


def _layer_norm(out, gamma, beta, d_true):
    """LayerNorm over the true (unpadded) feature count; padded columns of `out` are 0."""
    inv_d = 1.0 / float(d_true)
    lane = jax.lax.broadcasted_iota(jnp.int32, out.shape, 1)
    valid = lane < d_true
    mu = jnp.sum(out, axis=-1, keepdims=True) * inv_d
    c = out - mu
    cm = jnp.where(valid, c, 0.0)
    var = jnp.sum(cm * cm, axis=-1, keepdims=True) * inv_d
    return c * jax.lax.rsqrt(var + 1e-5) * gamma + beta


# ---------------------------------------------------- fused kernel (small D: Dp == 128)
def fused_attn_kernel(xq_ref, xkv_ref, mask_ref, wqkv_ref, bqkv_ref,
                      wm_ref, bm_ref, gamma_ref, beta_ref, out_ref,
                      q_sc, m_sc, l_sc, acc_sc, *, d_true):
    ki = pl.program_id(2)
    dp = q_sc.shape[-1]

    @pl.when(ki == 0)
    def _():
        xq = xq_ref[0].astype(jnp.bfloat16)
        q = jnp.dot(xq, wqkv_ref[:, 0:dp],
                    preferred_element_type=jnp.float32) + bqkv_ref[:, 0:dp]
        q_sc[...] = q.astype(jnp.bfloat16)          # scale already folded into Wq/bq
        m_sc[...] = jnp.full_like(m_sc, -jnp.inf)
        l_sc[...] = jnp.zeros_like(l_sc)
        acc_sc[...] = jnp.zeros_like(acc_sc)

    # k and v for this kv tile, computed in-kernel (no HBM round trip for q/k/v).
    xkv = xkv_ref[0].astype(jnp.bfloat16)
    kv = jnp.dot(xkv, wqkv_ref[:, dp:3 * dp],
                 preferred_element_type=jnp.float32) + bqkv_ref[:, dp:3 * dp]
    k = kv[:, 0:dp].astype(jnp.bfloat16)
    v = kv[:, dp:2 * dp].astype(jnp.bfloat16)

    s = jax.lax.dot_general(q_sc[...], k, (((1,), (1,)), ((), ())),
                            preferred_element_type=jnp.float32)       # (tq, tk)
    s = s + mask_ref[0]

    m_prev = m_sc[...]
    m_new = jnp.maximum(m_prev, jnp.max(s, axis=-1, keepdims=True))
    alpha = jnp.exp(m_prev - m_new)
    p = jnp.exp(s - m_new)
    l_sc[...] = alpha * l_sc[...] + jnp.sum(p, axis=-1, keepdims=True)
    acc_sc[...] = alpha * acc_sc[...] + jnp.dot(p.astype(jnp.bfloat16), v,
                                                preferred_element_type=jnp.float32)
    m_sc[...] = m_new

    @pl.when(ki == pl.num_programs(2) - 1)
    def _():
        y = acc_sc[...] / l_sc[...]                 # exact softmax normalization
        tmp = xq_ref[0] + y                         # residual in f32
        out = jnp.dot(tmp.astype(jnp.bfloat16), wm_ref[...],
                      preferred_element_type=jnp.float32) + bm_ref[...]
        out_ref[0] = _layer_norm(out, gamma_ref[...], beta_ref[...],
                                 d_true).astype(out_ref.dtype)


# ------------------------------------------------- large-D kernels (three-kernel path)
def qkv_proj_kernel(x_ref, w_ref, b_ref, o_ref):
    x = x_ref[...].astype(jnp.bfloat16)
    o_ref[...] = (jnp.dot(x, w_ref[...], preferred_element_type=jnp.float32)
                  + b_ref[...]).astype(o_ref.dtype)


def flash_attn_kernel(q_ref, k_ref, v_ref, mask_ref, x_ref, o_ref,
                      m_sc, l_sc, acc_sc):
    ki = pl.program_id(2)

    @pl.when(ki == 0)
    def _():
        m_sc[...] = jnp.full_like(m_sc, -jnp.inf)
        l_sc[...] = jnp.zeros_like(l_sc)
        acc_sc[...] = jnp.zeros_like(acc_sc)

    s = jax.lax.dot_general(q_ref[0], k_ref[0], (((1,), (1,)), ((), ())),
                            preferred_element_type=jnp.float32)
    s = s + mask_ref[0]

    m_prev = m_sc[...]
    m_new = jnp.maximum(m_prev, jnp.max(s, axis=-1, keepdims=True))
    alpha = jnp.exp(m_prev - m_new)
    p = jnp.exp(s - m_new)
    l_sc[...] = alpha * l_sc[...] + jnp.sum(p, axis=-1, keepdims=True)
    acc_sc[...] = alpha * acc_sc[...] + jnp.dot(p.astype(jnp.bfloat16), v_ref[0],
                                                preferred_element_type=jnp.float32)
    m_sc[...] = m_new

    @pl.when(ki == pl.num_programs(2) - 1)
    def _():
        y = acc_sc[...] / l_sc[...]
        o_ref[0] = (x_ref[0] + y).astype(o_ref.dtype)   # residual folded here


def mlp_ln_kernel(t_ref, wm_ref, bm_ref, gamma_ref, beta_ref, o_ref, acc_ref, *, d_true):
    kk = pl.program_id(1)

    @pl.when(kk == 0)
    def _():
        acc_ref[...] = jnp.zeros_like(acc_ref)

    acc_ref[...] += jnp.dot(t_ref[...], wm_ref[...], preferred_element_type=jnp.float32)

    @pl.when(kk == pl.num_programs(1) - 1)
    def _():
        out = acc_ref[...] + bm_ref[...]
        o_ref[...] = _layer_norm(out, gamma_ref[...], beta_ref[...],
                                 d_true).astype(o_ref.dtype)


# ------------------------------------------------------------------------ dispatchers
def _fused_small_d(x_p, mask_p, w_qkv, b_qkv, wm_p, bm_p, gamma_p, beta_p,
                   D, Dp, tq, tk, vmem_limit, out_dtype):
    B, S_pad, _ = x_p.shape
    nq, nk = S_pad // tq, S_pad // tk
    kernel = functools.partial(fused_attn_kernel, d_true=D)
    return pl.pallas_call(
        kernel,
        out_shape=jax.ShapeDtypeStruct((B, S_pad, Dp), out_dtype),
        grid_spec=pltpu.PrefetchScalarGridSpec(
            num_scalar_prefetch=0,
            grid=(B, nq, nk),
            in_specs=[
                pl.BlockSpec((1, tq, Dp), lambda b, qi, ki: (b, qi, 0)),    # x (q rows / residual)
                pl.BlockSpec((1, tk, Dp), lambda b, qi, ki: (b, ki, 0)),    # x (kv rows)
                pl.BlockSpec((1, tq, tk), lambda b, qi, ki: (b, qi, ki)),   # additive mask (f32)
                pl.BlockSpec((Dp, 3 * Dp), lambda b, qi, ki: (0, 0)),       # W_qkv (bf16)
                pl.BlockSpec((1, 3 * Dp), lambda b, qi, ki: (0, 0)),        # b_qkv
                pl.BlockSpec((Dp, Dp), lambda b, qi, ki: (0, 0)),           # Wm (bf16)
                pl.BlockSpec((1, Dp), lambda b, qi, ki: (0, 0)),            # bm
                pl.BlockSpec((1, Dp), lambda b, qi, ki: (0, 0)),            # gamma
                pl.BlockSpec((1, Dp), lambda b, qi, ki: (0, 0)),            # beta
            ],
            out_specs=pl.BlockSpec((1, tq, Dp), lambda b, qi, ki: (b, qi, 0)),
            scratch_shapes=[pltpu.VMEM((tq, Dp), jnp.bfloat16),   # cached (scaled) q
                            pltpu.VMEM((tq, 1), jnp.float32),     # running max
                            pltpu.VMEM((tq, 1), jnp.float32),     # running denom
                            pltpu.VMEM((tq, Dp), jnp.float32)]),  # output accumulator
        compiler_params=pltpu.CompilerParams(
            dimension_semantics=("parallel", "parallel", "arbitrary"),
            vmem_limit_bytes=vmem_limit),
    )(x_p, x_p, mask_p, w_qkv, b_qkv, wm_p, bm_p, gamma_p, beta_p)


def _large_d(x_p, mask_p, w_qkv, b_qkv, wm_p, bm_p, gamma_p, beta_p,
             D, Dp, tq, tk, vmem_limit, out_dtype):
    B, S_pad, _ = x_p.shape
    M = B * S_pad
    x2d = x_p.reshape(M, Dp)

    # ---- Kernel A: column-tiled QKV projection -> one lane-dense (M, 3*Dp) slab ----
    tm = _largest_tile(M, tuple(p for p in (1024, 512, 256, 128, 64, 32, 16, 8)
                                if p * Dp * 4 <= (8 << 20)) or (8,))
    tn = 3 * Dp if 3 * Dp <= 1536 else _largest_tile(3 * Dp, (768, 512, 384))
    qkv = pl.pallas_call(
        qkv_proj_kernel,
        out_shape=jax.ShapeDtypeStruct((M, 3 * Dp), jnp.bfloat16),
        grid_spec=pltpu.PrefetchScalarGridSpec(
            num_scalar_prefetch=0,
            grid=(M // tm, (3 * Dp) // tn),
            in_specs=[pl.BlockSpec((tm, Dp), lambda i, j: (i, 0)),
                      pl.BlockSpec((Dp, tn), lambda i, j: (0, j)),
                      pl.BlockSpec((1, tn), lambda i, j: (0, j))],
            out_specs=pl.BlockSpec((tm, tn), lambda i, j: (i, j)),
        ),
        compiler_params=pltpu.CompilerParams(
            dimension_semantics=("parallel", "arbitrary"),
            vmem_limit_bytes=vmem_limit),
    )(x2d, w_qkv, b_qkv)
    q = qkv[:, 0:Dp].reshape(B, S_pad, Dp)
    k = qkv[:, Dp:2 * Dp].reshape(B, S_pad, Dp)
    v = qkv[:, 2 * Dp:3 * Dp].reshape(B, S_pad, Dp)

    # ---- Kernel B: flash attention + residual (no weights resident in the kv loop) ----
    nq, nk = S_pad // tq, S_pad // tk
    t_res = pl.pallas_call(
        flash_attn_kernel,
        out_shape=jax.ShapeDtypeStruct((B, S_pad, Dp), jnp.bfloat16),
        grid_spec=pltpu.PrefetchScalarGridSpec(
            num_scalar_prefetch=0,
            grid=(B, nq, nk),
            in_specs=[
                pl.BlockSpec((1, tq, Dp), lambda b, qi, ki: (b, qi, 0)),
                pl.BlockSpec((1, tk, Dp), lambda b, qi, ki: (b, ki, 0)),
                pl.BlockSpec((1, tk, Dp), lambda b, qi, ki: (b, ki, 0)),
                pl.BlockSpec((1, tq, tk), lambda b, qi, ki: (b, qi, ki)),
                pl.BlockSpec((1, tq, Dp), lambda b, qi, ki: (b, qi, 0)),
            ],
            out_specs=pl.BlockSpec((1, tq, Dp), lambda b, qi, ki: (b, qi, 0)),
            scratch_shapes=[pltpu.VMEM((tq, 1), jnp.float32),
                            pltpu.VMEM((tq, 1), jnp.float32),
                            pltpu.VMEM((tq, Dp), jnp.float32)]),
        compiler_params=pltpu.CompilerParams(
            dimension_semantics=("parallel", "parallel", "arbitrary"),
            vmem_limit_bytes=vmem_limit),
    )(q, k, v, mask_p, x_p)

    # ---- Kernel C: contraction-tiled MLP + LayerNorm ----
    t2d = t_res.reshape(M, Dp)
    tm_c = _largest_tile(M, tuple(p for p in (512, 256, 128, 64, 32, 16, 8)
                                  if p * Dp * 4 <= (4 << 20)) or (8,))
    tk_c = _largest_tile(Dp, (512, 256, 128))
    kernel_c = functools.partial(mlp_ln_kernel, d_true=D)
    out2d = pl.pallas_call(
        kernel_c,
        out_shape=jax.ShapeDtypeStruct((M, Dp), out_dtype),
        grid_spec=pltpu.PrefetchScalarGridSpec(
            num_scalar_prefetch=0,
            grid=(M // tm_c, Dp // tk_c),
            in_specs=[
                pl.BlockSpec((tm_c, tk_c), lambda i, kk: (i, kk)),
                pl.BlockSpec((tk_c, Dp), lambda i, kk: (kk, 0)),
                pl.BlockSpec((1, Dp), lambda i, kk: (0, 0)),
                pl.BlockSpec((1, Dp), lambda i, kk: (0, 0)),
                pl.BlockSpec((1, Dp), lambda i, kk: (0, 0)),
            ],
            out_specs=pl.BlockSpec((tm_c, Dp), lambda i, kk: (i, 0)),
            scratch_shapes=[pltpu.VMEM((tm_c, Dp), jnp.float32)]),
        compiler_params=pltpu.CompilerParams(
            dimension_semantics=("parallel", "arbitrary"),
            vmem_limit_bytes=vmem_limit),
    )(t2d, wm_p, bm_p, gamma_p, beta_p)
    return out2d.reshape(B, S_pad, Dp)


def attention_block_tp10(x, mask, params):
    """Pallas implementation of AttentionBlockTP10.forward((x, mask)) -> (out, mask)."""
    B, S, D = x.shape
    Dp = max(128, _round_up(D, 128))
    S_pad, tq, tk = _seq_plan(S, B)
    vmem_limit = _vmem_limit_bytes()

    prepped = _prepare_params(params, D, Dp)
    x_p, mask_p = _pad_inputs(x, mask, S_pad, Dp)

    if Dp <= 128:
        out_p = _fused_small_d(x_p, mask_p, *prepped, D, Dp, tq, tk, vmem_limit, x.dtype)
    else:
        out_p = _large_d(x_p, mask_p, *prepped, D, Dp, tq, tk, vmem_limit, x.dtype)

    return out_p[:, :S, :D], mask


# ------------------------------------------------------------------ reference / params
def init_params(key, D):
    keys = jax.random.split(key, 8)
    scale = 1.0 / math.sqrt(D)
    u = lambda k, shape: jax.random.uniform(k, shape, jnp.float32, -scale, scale)
    wq, bq = u(keys[0], (D, D)), u(keys[1], (D,))
    wk, bk = u(keys[2], (D, D)), u(keys[3], (D,))
    wv, bv = u(keys[4], (D, D)), u(keys[5], (D,))
    wm, bm = u(keys[6], (D, D)), u(keys[7], (D,))
    gamma = jnp.ones((D,), jnp.float32)
    beta = jnp.zeros((D,), jnp.float32)
    return (wq, bq, wk, bk, wv, bv, wm, bm, gamma, beta)


def reference(x, mask, params):
    wq, bq, wk, bk, wv, bv, wm, bm, gamma, beta = params
    q = x @ wq.T + bq
    k = x @ wk.T + bk
    v = x @ wv.T + bv
    logits = jnp.einsum("bqd,bkd->bqk", q, k) / jnp.sqrt(jnp.float32(x.shape[-1]))
    probs = jax.nn.softmax(logits + mask, axis=-1)
    y = jnp.einsum("bqk,bkd->bqd", probs, v)
    tmp = x + y
    out = tmp @ wm.T + bm
    mu = out.mean(-1, keepdims=True)
    var = ((out - mu) ** 2).mean(-1, keepdims=True)
    return (out - mu) * jax.lax.rsqrt(var + 1e-5) * gamma + beta


if __name__ == "__main__":
    key = jax.random.PRNGKey(0)

    # Case 1: module-default-like small shapes -> fully fused single-kernel path.
    B, S, D = 2, 8, 32
    k1, k2, key = jax.random.split(key, 3)
    x = jax.random.normal(k1, (B, S, D), jnp.float32)
    mask = jnp.zeros((B, S, S), jnp.float32).at[1, :, -2:].set(-1e9)
    params = init_params(k2, D)

    out, mask_out = attention_block_tp10(x, mask, params)
    out = jax.block_until_ready(out)
    ref = reference(x, mask, params)
    assert out.shape == ref.shape
    assert jnp.allclose(out, ref, atol=5e-2, rtol=5e-2), "case1 mismatch vs reference"
    assert jnp.array_equal(mask_out, mask)

    # Case 2: D > 128 and ragged S -> padded three-kernel path (also exercises B == 1).
    B2, S2, D2 = 1, 12, 130
    k3, k4, key = jax.random.split(key, 3)
    x2 = jax.random.normal(k3, (B2, S2, D2), jnp.float32)
    mask2 = jnp.zeros((B2, S2, S2), jnp.float32).at[0, :, -3:].set(-1e9)
    params2 = init_params(k4, D2)

    out2, _ = attention_block_tp10(x2, mask2, params2)
    out2 = jax.block_until_ready(out2)
    ref2 = reference(x2, mask2, params2)
    assert jnp.allclose(out2, ref2, atol=5e-2, rtol=5e-2), "case2 mismatch vs reference"

    print("KERNEL_OK")
</pallas_src>

<mosaic_0001>
module attributes {stable_mosaic.version = 11 : i64} {
  func.func @fused_attn_kernel(%arg0: i32, %arg1: i32, %arg2: i32, %arg3: memref<1x8x128xf32, #tpu.memory_space<vmem>>, %arg4: memref<1x8x128xf32, #tpu.memory_space<vmem>>, %arg5: memref<1x8x8xf32, #tpu.memory_space<vmem>>, %arg6: memref<128x384xbf16, #tpu.memory_space<vmem>>, %arg7: memref<1x384xf32, #tpu.memory_space<vmem>>, %arg8: memref<128x128xbf16, #tpu.memory_space<vmem>>, %arg9: memref<1x128xf32, #tpu.memory_space<vmem>>, %arg10: memref<1x128xf32, #tpu.memory_space<vmem>>, %arg11: memref<1x128xf32, #tpu.memory_space<vmem>>, %arg12: memref<1x8x128xf32, #tpu.memory_space<vmem>>, %arg13: memref<8x128xbf16, #tpu.memory_space<vmem>>, %arg14: memref<8x1xf32, #tpu.memory_space<vmem>>, %arg15: memref<8x1xf32, #tpu.memory_space<vmem>>, %arg16: memref<8x128xf32, #tpu.memory_space<vmem>>) attributes {dimension_semantics = [#tpu.dimension_semantics<parallel>, #tpu.dimension_semantics<parallel>, #tpu.dimension_semantics<arbitrary>], iteration_bounds = array<i64: 2, 1, 1>, scalar_prefetch = 0 : i64, scratch_operands = 4 : i64, tpu.core_type = #tpu.core_type<tc>, window_params = [{transform_indices = @transform_0, window_bounds = array<i64: 1, 8, 128>}, {transform_indices = @transform_1, window_bounds = array<i64: 1, 8, 128>}, {transform_indices = @transform_2, window_bounds = array<i64: 1, 8, 8>}, {pipeline_mode = #tpu.pipeline_mode<synchronous>, transform_indices = @transform_3, window_bounds = array<i64: 128, 384>}, {pipeline_mode = #tpu.pipeline_mode<synchronous>, transform_indices = @transform_4, window_bounds = array<i64: 1, 384>}, {pipeline_mode = #tpu.pipeline_mode<synchronous>, transform_indices = @transform_5, window_bounds = array<i64: 128, 128>}, {pipeline_mode = #tpu.pipeline_mode<synchronous>, transform_indices = @transform_6, window_bounds = array<i64: 1, 128>}, {pipeline_mode = #tpu.pipeline_mode<synchronous>, transform_indices = @transform_7, window_bounds = array<i64: 1, 128>}, {pipeline_mode = #tpu.pipeline_mode<synchronous>, transform_indices = @transform_8, window_bounds = array<i64: 1, 128>}, {transform_indices = @transform_9, window_bounds = array<i64: 1, 8, 128>}]} {
    %c0_i32 = arith.constant 0 : i32
    %0 = arith.cmpi eq, %arg2, %c0_i32 : i32
    %1 = arith.extui %0 : i1 to i32
    %c0_i32_0 = arith.constant 0 : i32
    %2 = arith.cmpi ne, %1, %c0_i32_0 : i32
    scf.if %2 {
      %c0_29 = arith.constant 0 : index
      %c0_30 = arith.constant 0 : index
      %c0_31 = arith.constant 0 : index
      %46 = vector.load %arg3[%c0_29, %c0_30, %c0_31] : memref<1x8x128xf32, #tpu.memory_space<vmem>>, vector<1x8x128xf32>
      %47 = vector.shape_cast %46 : vector<1x8x128xf32> to vector<8x128xf32>
      %48 = arith.truncf %47 : vector<8x128xf32> to vector<8x128xbf16>
      %c0_32 = arith.constant 0 : index
      %c0_33 = arith.constant 0 : index
      %49 = vector.load %arg6[%c0_32, %c0_33] : memref<128x384xbf16, #tpu.memory_space<vmem>>, vector<128x128xbf16>
      %cst_34 = arith.constant dense<0.000000e+00> : vector<8x128xf32>
      %50 = tpu.matmul %48, %49, %cst_34 {dimension_numbers = #tpu.dot_dimension_numbers<[1], [0], [0], [1], [0, 0, 1, 1], [], []>} : vector<8x128xbf16>, vector<128x128xbf16>, vector<8x128xf32> -> vector<8x128xf32>
      %c0_35 = arith.constant 0 : index
      %c0_36 = arith.constant 0 : index
      %51 = vector.load %arg7[%c0_35, %c0_36] : memref<1x384xf32, #tpu.memory_space<vmem>>, vector<1x128xf32>
      %52 = vector.broadcast %51 : vector<1x128xf32> to vector<8x128xf32>
      %53 = arith.addf %50, %52 : vector<8x128xf32>
      %54 = arith.truncf %53 : vector<8x128xf32> to vector<8x128xbf16>
      %c0_37 = arith.constant 0 : index
      %c0_38 = arith.constant 0 : index
      %55 = vector.load %arg13[%c0_37, %c0_38] : memref<8x128xbf16, #tpu.memory_space<vmem>>, vector<8x128xbf16>
      tpu.vector_store %arg13[%c0_37, %c0_38], %54 {strides = array<i32>} : memref<8x128xbf16, #tpu.memory_space<vmem>>, vector<8x128xbf16>,
      %cst_39 = arith.constant 0xFF800000 : f32
      %56 = vector.broadcast %cst_39 : f32 to vector<8x1xf32>
      %c0_40 = arith.constant 0 : index
      %c0_41 = arith.constant 0 : index
      %57 = vector.load %arg14[%c0_40, %c0_41] : memref<8x1xf32, #tpu.memory_space<vmem>>, vector<8x1xf32>
      tpu.vector_store %arg14[%c0_40, %c0_41], %56 {strides = array<i32>} : memref<8x1xf32, #tpu.memory_space<vmem>>, vector<8x1xf32>,
      %cst_42 = arith.constant 0.000000e+00 : f32
      %58 = vector.broadcast %cst_42 : f32 to vector<8x1xf32>
      %c0_43 = arith.constant 0 : index
      %c0_44 = arith.constant 0 : index
      %59 = vector.load %arg15[%c0_43, %c0_44] : memref<8x1xf32, #tpu.memory_space<vmem>>, vector<8x1xf32>
      tpu.vector_store %arg15[%c0_43, %c0_44], %58 {strides = array<i32>} : memref<8x1xf32, #tpu.memory_space<vmem>>, vector<8x1xf32>,
      %cst_45 = arith.constant 0.000000e+00 : f32
      %60 = vector.broadcast %cst_45 : f32 to vector<8x128xf32>
      %c0_46 = arith.constant 0 : index
      %c0_47 = arith.constant 0 : index
      %61 = vector.load %arg16[%c0_46, %c0_47] : memref<8x128xf32, #tpu.memory_space<vmem>>, vector<8x128xf32>
      tpu.vector_store %arg16[%c0_46, %c0_47], %60 {strides = array<i32>} : memref<8x128xf32, #tpu.memory_space<vmem>>, vector<8x128xf32>,
    } else {
    }
    %c0 = arith.constant 0 : index
    %c0_1 = arith.constant 0 : index
    %c0_2 = arith.constant 0 : index
    %3 = vector.load %arg4[%c0, %c0_1, %c0_2] : memref<1x8x128xf32, #tpu.memory_space<vmem>>, vector<1x8x128xf32>
    %4 = vector.shape_cast %3 : vector<1x8x128xf32> to vector<8x128xf32>
    %5 = arith.truncf %4 : vector<8x128xf32> to vector<8x128xbf16>
    %c0_3 = arith.constant 0 : index
    %c128 = arith.constant 128 : index
    %6 = vector.load %arg6[%c0_3, %c128] : memref<128x384xbf16, #tpu.memory_space<vmem>>, vector<128x256xbf16>
    %cst = arith.constant dense<0.000000e+00> : vector<8x256xf32>
    %7 = tpu.matmul %5, %6, %cst {dimension_numbers = #tpu.dot_dimension_numbers<[1], [0], [0], [1], [0, 0, 1, 1], [], []>} : vector<8x128xbf16>, vector<128x256xbf16>, vector<8x256xf32> -> vector<8x256xf32>
    %c0_4 = arith.constant 0 : index
    %c128_5 = arith.constant 128 : index
    %8 = vector.load %arg7[%c0_4, %c128_5] : memref<1x384xf32, #tpu.memory_space<vmem>>, vector<1x256xf32>
    %9 = vector.broadcast %8 : vector<1x256xf32> to vector<8x256xf32>
    %10 = arith.addf %7, %9 : vector<8x256xf32>
    %11 = vector.extract_strided_slice %10 {offsets = [0, 0], sizes = [8, 128], strides = [1, 1]} : vector<8x256xf32> to vector<8x128xf32>
    %12 = arith.truncf %11 : vector<8x128xf32> to vector<8x128xbf16>
    %13 = vector.extract_strided_slice %10 {offsets = [0, 128], sizes = [8, 128], strides = [1, 1]} : vector<8x256xf32> to vector<8x128xf32>
    %14 = arith.truncf %13 : vector<8x128xf32> to vector<8x128xbf16>
    %c0_6 = arith.constant 0 : index
    %c0_7 = arith.constant 0 : index
    %15 = vector.load %arg13[%c0_6, %c0_7] : memref<8x128xbf16, #tpu.memory_space<vmem>>, vector<8x128xbf16>
    %cst_8 = arith.constant dense<0.000000e+00> : vector<8x8xf32>
    %16 = tpu.matmul %15, %12, %cst_8 {dimension_numbers = #tpu.dot_dimension_numbers<[1], [1], [0], [0], [0, 0, 1, 0], [], []>} : vector<8x128xbf16>, vector<8x128xbf16>, vector<8x8xf32> -> vector<8x8xf32>
    %c0_9 = arith.constant 0 : index
    %c0_10 = arith.constant 0 : index
    %c0_11 = arith.constant 0 : index
    %17 = vector.load %arg5[%c0_9, %c0_10, %c0_11] : memref<1x8x8xf32, #tpu.memory_space<vmem>>, vector<1x8x8xf32>
    %18 = vector.shape_cast %17 : vector<1x8x8xf32> to vector<8x8xf32>
    %19 = arith.addf %16, %18 : vector<8x8xf32>
    %c0_12 = arith.constant 0 : index
    %c0_13 = arith.constant 0 : index
    %20 = vector.load %arg14[%c0_12, %c0_13] : memref<8x1xf32, #tpu.memory_space<vmem>>, vector<8x1xf32>
    %cst_14 = arith.constant dense<0xFF800000> : vector<8xf32>
    %21 = vector.multi_reduction <maximumf>, %19, %cst_14 [1] : vector<8x8xf32> to vector<8xf32>
    %22 = vector.shape_cast %21 : vector<8xf32> to vector<8x1xf32>
    %23 = arith.maximumf %20, %22 : vector<8x1xf32>
    %24 = arith.subf %20, %23 : vector<8x1xf32>
    %25 = math.exp %24 : vector<8x1xf32>
    %26 = vector.broadcast %23 : vector<8x1xf32> to vector<8x8xf32>
    %27 = arith.subf %19, %26 : vector<8x8xf32>
    %28 = math.exp %27 : vector<8x8xf32>
    %c0_15 = arith.constant 0 : index
    %c0_16 = arith.constant 0 : index
    %29 = vector.load %arg15[%c0_15, %c0_16] : memref<8x1xf32, #tpu.memory_space<vmem>>, vector<8x1xf32>
    %30 = arith.mulf %25, %29 : vector<8x1xf32>
    %cst_17 = arith.constant dense<0.000000e+00> : vector<8xf32>
    %31 = vector.multi_reduction <add>, %28, %cst_17 [1] : vector<8x8xf32> to vector<8xf32>
    %32 = vector.shape_cast %31 : vector<8xf32> to vector<8x1xf32>
    %33 = arith.addf %30, %32 : vector<8x1xf32>
    %c0_18 = arith.constant 0 : index
    %c0_19 = arith.constant 0 : index
    %34 = vector.load %arg15[%c0_18, %c0_19] : memref<8x1xf32, #tpu.memory_space<vmem>>, vector<8x1xf32>
    tpu.vector_store %arg15[%c0_18, %c0_19], %33 {strides = array<i32>} : memref<8x1xf32, #tpu.memory_space<vmem>>, vector<8x1xf32>,
    %c0_20 = arith.constant 0 : index
    %c0_21 = arith.constant 0 : index
    %35 = vector.load %arg16[%c0_20, %c0_21] : memref<8x128xf32, #tpu.memory_space<vmem>>, vector<8x128xf32>
    %36 = vector.broadcast %25 : vector<8x1xf32> to vector<8x128xf32>
    %37 = arith.mulf %36, %35 : vector<8x128xf32>
    %38 = arith.truncf %28 : vector<8x8xf32> to vector<8x8xbf16>
    %cst_22 = arith.constant dense<0.000000e+00> : vector<8x128xf32>
    %39 = tpu.matmul %38, %14, %cst_22 {dimension_numbers = #tpu.dot_dimension_numbers<[1], [0], [0], [1], [0, 0, 1, 1], [], []>} : vector<8x8xbf16>, vector<8x128xbf16>, vector<8x128xf32> -> vector<8x128xf32>
    %40 = arith.addf %37, %39 : vector<8x128xf32>
    %c0_23 = arith.constant 0 : index
    %c0_24 = arith.constant 0 : index
    %41 = vector.load %arg16[%c0_23, %c0_24] : memref<8x128xf32, #tpu.memory_space<vmem>>, vector<8x128xf32>
    tpu.vector_store %arg16[%c0_23, %c0_24], %40 {strides = array<i32>} : memref<8x128xf32, #tpu.memory_space<vmem>>, vector<8x128xf32>,
    %c0_25 = arith.constant 0 : index
    %c0_26 = arith.constant 0 : index
    %42 = vector.load %arg14[%c0_25, %c0_26] : memref<8x1xf32, #tpu.memory_space<vmem>>, vector<8x1xf32>
    tpu.vector_store %arg14[%c0_25, %c0_26], %23 {strides = array<i32>} : memref<8x1xf32, #tpu.memory_space<vmem>>, vector<8x1xf32>,
    %c0_i32_27 = arith.constant 0 : i32
    %43 = arith.cmpi eq, %arg2, %c0_i32_27 : i32
    %44 = arith.extui %43 : i1 to i32
    %c0_i32_28 = arith.constant 0 : i32
    %45 = arith.cmpi ne, %44, %c0_i32_28 : i32
    scf.if %45 {
      %c0_29 = arith.constant 0 : index
      %c0_30 = arith.constant 0 : index
      %46 = vector.load %arg16[%c0_29, %c0_30] : memref<8x128xf32, #tpu.memory_space<vmem>>, vector<8x128xf32>
      %c0_31 = arith.constant 0 : index
      %c0_32 = arith.constant 0 : index
      %47 = vector.load %arg15[%c0_31, %c0_32] : memref<8x1xf32, #tpu.memory_space<vmem>>, vector<8x1xf32>
      %48 = vector.broadcast %47 : vector<8x1xf32> to vector<8x128xf32>
      %49 = arith.divf %46, %48 : vector<8x128xf32>
      %c0_33 = arith.constant 0 : index
      %c0_34 = arith.constant 0 : index
      %c0_35 = arith.constant 0 : index
      %50 = vector.load %arg3[%c0_33, %c0_34, %c0_35] : memref<1x8x128xf32, #tpu.memory_space<vmem>>, vector<1x8x128xf32>
      %51 = vector.shape_cast %50 : vector<1x8x128xf32> to vector<8x128xf32>
      %52 = arith.addf %51, %49 : vector<8x128xf32>
      %53 = arith.truncf %52 : vector<8x128xf32> to vector<8x128xbf16>
      %c0_36 = arith.constant 0 : index
      %c0_37 = arith.constant 0 : index
      %54 = vector.load %arg8[%c0_36, %c0_37] : memref<128x128xbf16, #tpu.memory_space<vmem>>, vector<128x128xbf16>
      %cst_38 = arith.constant dense<0.000000e+00> : vector<8x128xf32>
      %55 = tpu.matmul %53, %54, %cst_38 {dimension_numbers = #tpu.dot_dimension_numbers<[1], [0], [0], [1], [0, 0, 1, 1], [], []>} : vector<8x128xbf16>, vector<128x128xbf16>, vector<8x128xf32> -> vector<8x128xf32>
      %c0_39 = arith.constant 0 : index
      %c0_40 = arith.constant 0 : index
      %56 = vector.load %arg9[%c0_39, %c0_40] : memref<1x128xf32, #tpu.memory_space<vmem>>, vector<1x128xf32>
      %57 = vector.broadcast %56 : vector<1x128xf32> to vector<8x128xf32>
      %58 = arith.addf %55, %57 : vector<8x128xf32>
      %c0_41 = arith.constant 0 : index
      %c0_42 = arith.constant 0 : index
      %59 = vector.load %arg10[%c0_41, %c0_42] : memref<1x128xf32, #tpu.memory_space<vmem>>, vector<1x128xf32>
      %c0_43 = arith.constant 0 : index
      %c0_44 = arith.constant 0 : index
      %60 = vector.load %arg11[%c0_43, %c0_44] : memref<1x128xf32, #tpu.memory_space<vmem>>, vector<1x128xf32>
      %61 = tpu.iota {dimensions = array<i32: 1>} : vector<8x128xi32>
      %c32_i32 = arith.constant 32 : i32
      %62 = vector.broadcast %c32_i32 : i32 to vector<8x128xi32>
      %63 = arith.cmpi slt, %61, %62 : vector<8x128xi32>
      %cst_45 = arith.constant dense<0.000000e+00> : vector<8xf32>
      %64 = vector.multi_reduction <add>, %58, %cst_45 [1] : vector<8x128xf32> to vector<8xf32>
      %65 = vector.shape_cast %64 : vector<8xf32> to vector<8x1xf32>
      %cst_46 = arith.constant 3.125000e-02 : f32
      %66 = vector.broadcast %cst_46 : f32 to vector<8x1xf32>
      %67 = arith.mulf %65, %66 : vector<8x1xf32>
      %68 = vector.broadcast %67 : vector<8x1xf32> to vector<8x128xf32>
      %69 = arith.subf %58, %68 : vector<8x128xf32>
      %cst_47 = arith.constant 0.000000e+00 : f32
      %70 = vector.broadcast %cst_47 : f32 to vector<8x128xf32>
      %71 = arith.select %63, %69, %70 : vector<8x128xi1>, vector<8x128xf32>
      %72 = arith.mulf %71, %71 : vector<8x128xf32>
      %cst_48 = arith.constant dense<0.000000e+00> : vector<8xf32>
      %73 = vector.multi_reduction <add>, %72, %cst_48 [1] : vector<8x128xf32> to vector<8xf32>
      %74 = vector.shape_cast %73 : vector<8xf32> to vector<8x1xf32>
      %cst_49 = arith.constant 3.125000e-02 : f32
      %75 = vector.broadcast %cst_49 : f32 to vector<8x1xf32>
      %76 = arith.mulf %74, %75 : vector<8x1xf32>
      %cst_50 = arith.constant 9.99999974E-6 : f32
      %77 = vector.broadcast %cst_50 : f32 to vector<8x1xf32>
      %78 = arith.addf %76, %77 : vector<8x1xf32>
      %79 = math.rsqrt %78 : vector<8x1xf32>
      %80 = vector.broadcast %79 : vector<8x1xf32> to vector<8x128xf32>
      %81 = arith.mulf %69, %80 : vector<8x128xf32>
      %82 = vector.broadcast %59 : vector<1x128xf32> to vector<8x128xf32>
      %83 = arith.mulf %81, %82 : vector<8x128xf32>
      %84 = vector.broadcast %60 : vector<1x128xf32> to vector<8x128xf32>
      %85 = arith.addf %83, %84 : vector<8x128xf32>
      %c0_51 = arith.constant 0 : index
      %c0_52 = arith.constant 0 : index
      %c0_53 = arith.constant 0 : index
      %86 = vector.load %arg12[%c0_51, %c0_52, %c0_53] : memref<1x8x128xf32, #tpu.memory_space<vmem>>, vector<1x8x128xf32>
      %87 = vector.shape_cast %86 : vector<1x8x128xf32> to vector<8x128xf32>
      %88 = vector.shape_cast %85 : vector<8x128xf32> to vector<1x8x128xf32>
      tpu.vector_store %arg12[%c0_51, %c0_52, %c0_53], %88 {strides = array<i32>} : memref<1x8x128xf32, #tpu.memory_space<vmem>>, vector<1x8x128xf32>,
    } else {
    }
    return
  }
  func.func @transform_0(%arg0: i32, %arg1: i32, %arg2: i32) -> (i32, i32, i32) {
    %c0_i32 = arith.constant 0 : i32
    %c0_i32_0 = arith.constant 0 : i32
    return %arg0, %arg1, %c0_i32 : i32, i32, i32
  }
  func.func @transform_1(%arg0: i32, %arg1: i32, %arg2: i32) -> (i32, i32, i32) {
    %c0_i32 = arith.constant 0 : i32
    %c0_i32_0 = arith.constant 0 : i32
    return %arg0, %arg2, %c0_i32 : i32, i32, i32
  }
  func.func @transform_2(%arg0: i32, %arg1: i32, %arg2: i32) -> (i32, i32, i32) {
    %c0_i32 = arith.constant 0 : i32
    return %arg0, %arg1, %arg2 : i32, i32, i32
  }
  func.func @transform_3(%arg0: i32, %arg1: i32, %arg2: i32) -> (i32, i32) {
    %c0_i32 = arith.constant 0 : i32
    %c0_i32_0 = arith.constant 0 : i32
    %c0_i32_1 = arith.constant 0 : i32
    return %c0_i32, %c0_i32_0 : i32, i32
  }
  func.func @transform_4(%arg0: i32, %arg1: i32, %arg2: i32) -> (i32, i32) {
    %c0_i32 = arith.constant 0 : i32
    %c0_i32_0 = arith.constant 0 : i32
    %c0_i32_1 = arith.constant 0 : i32
    return %c0_i32, %c0_i32_0 : i32, i32
  }
  func.func @transform_5(%arg0: i32, %arg1: i32, %arg2: i32) -> (i32, i32) {
    %c0_i32 = arith.constant 0 : i32
    %c0_i32_0 = arith.constant 0 : i32
    %c0_i32_1 = arith.constant 0 : i32
    return %c0_i32, %c0_i32_0 : i32, i32
  }
  func.func @transform_6(%arg0: i32, %arg1: i32, %arg2: i32) -> (i32, i32) {
    %c0_i32 = arith.constant 0 : i32
    %c0_i32_0 = arith.constant 0 : i32
    %c0_i32_1 = arith.constant 0 : i32
    return %c0_i32, %c0_i32_0 : i32, i32
  }
  func.func @transform_7(%arg0: i32, %arg1: i32, %arg2: i32) -> (i32, i32) {
    %c0_i32 = arith.constant 0 : i32
    %c0_i32_0 = arith.constant 0 : i32
    %c0_i32_1 = arith.constant 0 : i32
    return %c0_i32, %c0_i32_0 : i32, i32
  }
  func.func @transform_8(%arg0: i32, %arg1: i32, %arg2: i32) -> (i32, i32) {
    %c0_i32 = arith.constant 0 : i32
    %c0_i32_0 = arith.constant 0 : i32
    %c0_i32_1 = arith.constant 0 : i32
    return %c0_i32, %c0_i32_0 : i32, i32
  }
  func.func @transform_9(%arg0: i32, %arg1: i32, %arg2: i32) -> (i32, i32, i32) {
    %c0_i32 = arith.constant 0 : i32
    %c0_i32_0 = arith.constant 0 : i32
    return %arg0, %arg1, %c0_i32 : i32, i32, i32
  }
}

</mosaic_0001>

<llo_original>
// kernel: tpu_custom_call.1
$region0: #{tpu_custom_call.1}
  #allocation0 [shape = 'u32[]', space=smem, size = 0x4, offset = 0x4, fixed_abs, tag = 'smem constant byte address 0x4 - core index']
  #allocation1 [shape = 'u32[144,128]{1,0:T(1,128)}', space=vmem, size = 0x12000, scoped, tag = 'internal scratch']
  #allocation2 [shape = 'bf16[8,128]{1,0:T(8,128)(2,1)}', space=vmem, size = 0x800, scoped, tag = 'scratch operand']
  #allocation3 [shape = 'f32[8,1]{1,0:T(8,128)}', space=vmem, size = 0x1000, scoped, tag = 'scratch operand']
  #allocation4 [shape = 'f32[8,1]{1,0:T(8,128)}', space=vmem, size = 0x1000, scoped, tag = 'scratch operand']
  #allocation5 [shape = 'f32[8,128]{1,0:T(8,128)}', space=vmem, size = 0x1000, scoped, tag = 'scratch operand']
  %s0 = inlined_call_operand.hbm [shape: f32[2,8,128], index: 0, kind: input, shape index: {}]
  %s1 = inlined_call_operand.hbm [shape: f32[2,8,128], index: 1, kind: input, shape index: {}]
  %s2 = inlined_call_operand.hbm [shape: f32[2,8,8], index: 2, kind: input, shape index: {}]
  %s3 = inlined_call_operand.hbm [shape: bf16[128,384], index: 3, kind: input, shape index: {}]
  %s4 = inlined_call_operand.hbm [shape: f32[1,384], index: 4, kind: input, shape index: {}]
  %s5 = inlined_call_operand.hbm [shape: bf16[128,128], index: 5, kind: input, shape index: {}]
  %s6 = inlined_call_operand.hbm [shape: f32[1,128], index: 6, kind: input, shape index: {}]
  %s7 = inlined_call_operand.hbm [shape: f32[1,128], index: 7, kind: input, shape index: {}]
  %s8 = inlined_call_operand.hbm [shape: f32[1,128], index: 8, kind: input, shape index: {}]
  %s9 = inlined_call_operand.hbm [shape: f32[2,8,128], index: 9, kind: output, shape index: {}]
  %s10 = sld [smem:[#allocation0]]
  $region113: #{tpu_custom_call.1} parent=0
    _
  %s12 = ssub.s32 1, %s10
  %s13 = scalar_select 0, %s12, %s10
  $region1: #{tpu_custom_call.1} parent=0
    #allocation6 [shape = 'u8[8192]{0}', space=vmem, size = 0x2000, scoped, tag = 'input window, operand 0']
    #allocation7 [shape = 's32[2]{0}', space=sflag, size = 0x8, scoped, tag = 'scoped memory for tpu_custom_call.1']
    #allocation8 [shape = 's32[2]{0}', space=sflag, size = 0x8, scoped, tag = 'scoped memory for tpu_custom_call.1']
    #allocation9 [shape = 'u8[8192]{0}', space=vmem, size = 0x2000, scoped, tag = 'input window, operand 1']
    #allocation10 [shape = 's32[2]{0}', space=sflag, size = 0x8, scoped, tag = 'scoped memory for tpu_custom_call.1']
    #allocation11 [shape = 'u8[8192]{0}', space=vmem, size = 0x2000, scoped, tag = 'input window, operand 2']
    #allocation12 [shape = 'u8[98304]{0}', space=vmem, size = 0x18000, scoped, tag = 'input window, operand 3, single buffered']
    #allocation13 [shape = 's32[1]{0}', space=sflag, size = 0x4, scoped, tag = 'scoped memory for tpu_custom_call.1']
    #allocation14 [shape = 'u8[1536]{0}', space=vmem, size = 0x800, scoped, tag = 'input window, operand 4, single buffered']
    #allocation15 [shape = 'u8[32768]{0}', space=vmem, size = 0x8000, scoped, tag = 'input window, operand 5, single buffered']
    #allocation16 [shape = 's32[1]{0}', space=sflag, size = 0x4, scoped, tag = 'scoped memory for tpu_custom_call.1']
    #allocation17 [shape = 'u8[512]{0}', space=vmem, size = 0x400, scoped, tag = 'input window, operand 6, single buffered']
    #allocation18 [shape = 'u8[512]{0}', space=vmem, size = 0x400, scoped, tag = 'input window, operand 7, single buffered']
    #allocation19 [shape = 's32[1]{0}', space=sflag, size = 0x4, scoped, tag = 'scoped memory for tpu_custom_call.1']
    #allocation20 [shape = 'u8[512]{0}', space=vmem, size = 0x400, scoped, tag = 'input window, operand 8, single buffered']
    #allocation21 [shape = 'u8[8192]{0}', space=vmem, size = 0x2000, scoped, tag = 'output window, operand 0']
    %14 = vsyncpa [#allocation7], 0
    %s15 = scalar_lea.sflag [#allocation7], 1
    %16 = vsyncpa %s15, 0
    %17 = vsyncpa [#allocation10], 0
    %s18 = scalar_lea.sflag [#allocation10], 1
    %19 = vsyncpa %s18, 0
    %20 = vsyncpa [#allocation13], 0
    %21 = vsyncpa [#allocation16], 0
    %22 = vsyncpa [#allocation19], 0
    %23 = vsyncpa [#allocation8], 0
    %s24 = scalar_lea.sflag [#allocation8], 1
    %25 = vsyncpa %s24, 0
    loop: start=0, step=1, limit=4
    $region2: #{tpu_custom_call.1} parent=1 // loop_pre_header
      _
    $region3: #{tpu_custom_call.1} parent=1 // loop_header
      %s27 = sphi 0, %s31
      %p28 = scmp.ge.s32.totalorder %s27, 4
      %s34 = sphi 0, %s53
      %s35 = sphi 0, %s49
      %s36 = sphi 0, %s45
      %s37 = sphi 0, %s34
      %s38 = sphi 0, %s35
      %s39 = sphi 0, %s36
      %s40 = sphi 0, %s37
      %s41 = sphi 0, %s38
      %s42 = sphi 0, %s39
      %s58 = sphi 0, %s60
      %s61 = sphi 0, %s58
      %s62 = sphi 0, %s61
      %s78 = sphi 0, %s62
      %s86 = sphi 0, %s88
      %s89 = sphi 0, %s86
      %s90 = sphi 0, %s89
      %s106 = sphi 0, %s90
      %s116 = sphi 0, %s118
      %s119 = sphi 0, %s116
      %s120 = sphi 0, %s119
      %s136 = sphi 0, %s120
      %s140 = sphi 0, %s140
      %s142 = sphi 0, %s140
      %s143 = sphi 0, %s142
      %s157 = sphi 0, %s143
      %s161 = sphi 0, %s161
      %s163 = sphi 0, %s161
      %s164 = sphi 0, %s163
      %s178 = sphi 0, %s164
      %s182 = sphi 0, %s182
      %s184 = sphi 0, %s182
      %s185 = sphi 0, %s184
      %s199 = sphi 0, %s185
      %s203 = sphi 0, %s203
      %s205 = sphi 0, %s203
      %s206 = sphi 0, %s205
      %s220 = sphi 0, %s206
      %s224 = sphi 0, %s224
      %s226 = sphi 0, %s224
      %s227 = sphi 0, %s226
      %s241 = sphi 0, %s227
      %s245 = sphi 0, %s245
      %s247 = sphi 0, %s245
      %s248 = sphi 0, %s247
      %s262 = sphi 0, %s248
      %s270 = sphi 0, %s272
      %s273 = sphi 0, %s270
      %s274 = sphi 0, %s273
      %s290 = sphi 0, %s274
    $region4: #{tpu_custom_call.1} parent=1 // loop_header_branch
      %30 = sbr.rel (%p28) target = $region8
    $region5: #{tpu_custom_call.1} parent=1 // loop_body
      %s32 = ssub.s32 %s27, 1
      %s33 = ssub.s32 %s27, 2
      %s43 = sadd.s32 1, %s36
      %p44 = scmp.ge.s32.totalorder %s43, 1
      %s45 = scalar_select %p44, 0, %s43
      %s46 = sadd.s32 1, %s35
      %s47 = scalar_select %p44, %s46, %s35
      %p48 = scmp.ge.s32.totalorder %s47, 1
      %s49 = scalar_select %p48, 0, %s47
      %s50 = sadd.s32 1, %s34
      %s51 = scalar_select %p48, %s50, %s34
      %p52 = scmp.ge.s32.totalorder %s51, 2
      %s53 = scalar_select %p52, 0, %s51
      %s54 = ssub.s32 %s34, %s53
      %s55 = ssub.s32 %s35, %s49
      %s56 = sor.u32 %s54, %s55
      %p57 = scmp.eq.s32.totalorder %s56, 0
      %s59 = sadd.s32 %s58, 1
      %s60 = scalar_select %p57, %s58, %s59
      %p63 = pneg %p57
      %p64 = scmp.eq.s32.totalorder %s27, 1
      %p65 = por %p63, %p64
      %p66 = scmp.ne.s32.totalorder %s58, %s61
      %p67 = scmp.eq.s32.totalorder %s27, 0
      %p68 = por %p66, %p67
      %p69 = scmp.ne.s32.totalorder %s58, %s61
      %p70 = scmp.eq.s32.totalorder %s32, 1
      %p71 = por %p69, %p70
      %p72 = scmp.ne.s32.totalorder %s61, %s62
      %p73 = scmp.eq.s32.totalorder %s32, 0
      %p74 = por %p72, %p73
      %p75 = scmp.ne.s32.totalorder %s61, %s62
      %p76 = scmp.eq.s32.totalorder %s33, 1
      %p77 = por %p75, %p76
      %p79 = scmp.ne.s32.totalorder %s62, %s78
      %p80 = scmp.eq.s32.totalorder %s33, 0
      %p81 = por %p79, %p80
      %s82 = ssub.s32 %s34, %s53
      %s83 = ssub.s32 %s36, %s45
      %s84 = sor.u32 %s82, %s83
      %p85 = scmp.eq.s32.totalorder %s84, 0
      %s87 = sadd.s32 %s86, 1
      %s88 = scalar_select %p85, %s86, %s87
      %p91 = pneg %p85
      %p92 = scmp.eq.s32.totalorder %s27, 1
      %p93 = por %p91, %p92
      %p94 = scmp.ne.s32.totalorder %s86, %s89
      %p95 = scmp.eq.s32.totalorder %s27, 0
      %p96 = por %p94, %p95
      %p97 = scmp.ne.s32.totalorder %s86, %s89
      %p98 = scmp.eq.s32.totalorder %s32, 1
      %p99 = por %p97, %p98
      %p100 = scmp.ne.s32.totalorder %s89, %s90
      %p101 = scmp.eq.s32.totalorder %s32, 0
      %p102 = por %p100, %p101
      %p103 = scmp.ne.s32.totalorder %s89, %s90
      %p104 = scmp.eq.s32.totalorder %s33, 1
      %p105 = por %p103, %p104
      %p107 = scmp.ne.s32.totalorder %s90, %s106
      %p108 = scmp.eq.s32.totalorder %s33, 0
      %p109 = por %p107, %p108
      %s110 = ssub.s32 %s34, %s53
      %s111 = ssub.s32 %s35, %s49
      %s112 = sor.u32 %s110, %s111
      %s113 = ssub.s32 %s36, %s45
      %s114 = sor.u32 %s112, %s113
      %p115 = scmp.eq.s32.totalorder %s114, 0
      %s117 = sadd.s32 %s116, 1
      %s118 = scalar_select %p115, %s116, %s117
      %p121 = pneg %p115
      %p122 = scmp.eq.s32.totalorder %s27, 1
      %p123 = por %p121, %p122
      %p124 = scmp.ne.s32.totalorder %s116, %s119
      %p125 = scmp.eq.s32.totalorder %s27, 0
      %p126 = por %p124, %p125
      %p127 = scmp.ne.s32.totalorder %s116, %s119
      %p128 = scmp.eq.s32.totalorder %s32, 1
      %p129 = por %p127, %p128
      %p130 = scmp.ne.s32.totalorder %s119, %s120
      %p131 = scmp.eq.s32.totalorder %s32, 0
      %p132 = por %p130, %p131
      %p133 = scmp.ne.s32.totalorder %s119, %s120
      %p134 = scmp.eq.s32.totalorder %s33, 1
      %p135 = por %p133, %p134
      %p137 = scmp.ne.s32.totalorder %s120, %s136
      %p138 = scmp.eq.s32.totalorder %s33, 0
      %p139 = por %p137, %p138
      %s141 = sadd.s32 %s140, 1
      %p144 = scmp.eq.s32.totalorder %s27, 1
      %p145 = scmp.ne.s32.totalorder %s140, %s142
      %p146 = scmp.eq.s32.totalorder %s27, 0
      %p147 = por %p145, %p146
      %p148 = scmp.ne.s32.totalorder %s140, %s142
      %p149 = scmp.eq.s32.totalorder %s32, 1
      %p150 = por %p148, %p149
      %p151 = scmp.ne.s32.totalorder %s142, %s143
      %p152 = scmp.eq.s32.totalorder %s32, 0
      %p153 = por %p151, %p152
      %p154 = scmp.ne.s32.totalorder %s142, %s143
      %p155 = scmp.eq.s32.totalorder %s33, 1
      %p156 = por %p154, %p155
      %p158 = scmp.ne.s32.totalorder %s143, %s157
      %p159 = scmp.eq.s32.totalorder %s33, 0
      %p160 = por %p158, %p159
      %s162 = sadd.s32 %s161, 1
      %p165 = scmp.eq.s32.totalorder %s27, 1
      %p166 = scmp.ne.s32.totalorder %s161, %s163
      %p167 = scmp.eq.s32.totalorder %s27, 0
      %p168 = por %p166, %p167
      %p169 = scmp.ne.s32.totalorder %s161, %s163
      %p170 = scmp.eq.s32.totalorder %s32, 1
      %p171 = por %p169, %p170
      %p172 = scmp.ne.s32.totalorder %s163, %s164
      %p173 = scmp.eq.s32.totalorder %s32, 0
      %p174 = por %p172, %p173
      %p175 = scmp.ne.s32.totalorder %s163, %s164
      %p176 = scmp.eq.s32.totalorder %s33, 1
      %p177 = por %p175, %p176
      %p179 = scmp.ne.s32.totalorder %s164, %s178
      %p180 = scmp.eq.s32.totalorder %s33, 0
      %p181 = por %p179, %p180
      %s183 = sadd.s32 %s182, 1
      %p186 = scmp.eq.s32.totalorder %s27, 1
      %p187 = scmp.ne.s32.totalorder %s182, %s184
      %p188 = scmp.eq.s32.totalorder %s27, 0
      %p189 = por %p187, %p188
      %p190 = scmp.ne.s32.totalorder %s182, %s184
      %p191 = scmp.eq.s32.totalorder %s32, 1
      %p192 = por %p190, %p191
      %p193 = scmp.ne.s32.totalorder %s184, %s185
      %p194 = scmp.eq.s32.totalorder %s32, 0
      %p195 = por %p193, %p194
      %p196 = scmp.ne.s32.totalorder %s184, %s185
      %p197 = scmp.eq.s32.totalorder %s33, 1
      %p198 = por %p196, %p197
      %p200 = scmp.ne.s32.totalorder %s185, %s199
      %p201 = scmp.eq.s32.totalorder %s33, 0
      %p202 = por %p200, %p201
      %s204 = sadd.s32 %s203, 1
      %p207 = scmp.eq.s32.totalorder %s27, 1
      %p208 = scmp.ne.s32.totalorder %s203, %s205
      %p209 = scmp.eq.s32.totalorder %s27, 0
      %p210 = por %p208, %p209
      %p211 = scmp.ne.s32.totalorder %s203, %s205
      %p212 = scmp.eq.s32.totalorder %s32, 1
      %p213 = por %p211, %p212
      %p214 = scmp.ne.s32.totalorder %s205, %s206
      %p215 = scmp.eq.s32.totalorder %s32, 0
      %p216 = por %p214, %p215
      %p217 = scmp.ne.s32.totalorder %s205, %s206
      %p218 = scmp.eq.s32.totalorder %s33, 1
      %p219 = por %p217, %p218
      %p221 = scmp.ne.s32.totalorder %s206, %s220
      %p222 = scmp.eq.s32.totalorder %s33, 0
      %p223 = por %p221, %p222
      %s225 = sadd.s32 %s224, 1
      %p228 = scmp.eq.s32.totalorder %s27, 1
      %p229 = scmp.ne.s32.totalorder %s224, %s226
      %p230 = scmp.eq.s32.totalorder %s27, 0
      %p231 = por %p229, %p230
      %p232 = scmp.ne.s32.totalorder %s224, %s226
      %p233 = scmp.eq.s32.totalorder %s32, 1
      %p234 = por %p232, %p233
      %p235 = scmp.ne.s32.totalorder %s226, %s227
      %p236 = scmp.eq.s32.totalorder %s32, 0
      %p237 = por %p235, %p236
      %p238 = scmp.ne.s32.totalorder %s226, %s227
      %p239 = scmp.eq.s32.totalorder %s33, 1
      %p240 = por %p238, %p239
      %p242 = scmp.ne.s32.totalorder %s227, %s241
      %p243 = scmp.eq.s32.totalorder %s33, 0
      %p244 = por %p242, %p243
      %s246 = sadd.s32 %s245, 1
      %p249 = scmp.eq.s32.totalorder %s27, 1
      %p250 = scmp.ne.s32.totalorder %s245, %s247
      %p251 = scmp.eq.s32.totalorder %s27, 0
      %p252 = por %p250, %p251
      %p253 = scmp.ne.s32.totalorder %s245, %s247
      %p254 = scmp.eq.s32.totalorder %s32, 1
      %p255 = por %p253, %p254
      %p256 = scmp.ne.s32.totalorder %s247, %s248
      %p257 = scmp.eq.s32.totalorder %s32, 0
      %p258 = por %p256, %p257
      %p259 = scmp.ne.s32.totalorder %s247, %s248
      %p260 = scmp.eq.s32.totalorder %s33, 1
      %p261 = por %p259, %p260
      %p263 = scmp.ne.s32.totalorder %s248, %s262
      %p264 = scmp.eq.s32.totalorder %s33, 0
      %p265 = por %p263, %p264
      %s266 = ssub.s32 %s34, %s53
      %s267 = ssub.s32 %s35, %s49
      %s268 = sor.u32 %s266, %s267
      %p269 = scmp.eq.s32.totalorder %s268, 0
      %s271 = sadd.s32 %s270, 1
      %s272 = scalar_select %p269, %s270, %s271
      %p275 = pneg %p269
      %p276 = scmp.eq.s32.totalorder %s27, 1
      %p277 = por %p275, %p276
      %p278 = scmp.ne.s32.totalorder %s270, %s273
      %p279 = scmp.eq.s32.totalorder %s27, 0
      %p280 = por %p278, %p279
      %p281 = scmp.ne.s32.totalorder %s270, %s273
      %p282 = scmp.eq.s32.totalorder %s32, 1
      %p283 = por %p281, %p282
      %p284 = scmp.ne.s32.totalorder %s273, %s274
      %p285 = scmp.eq.s32.totalorder %s32, 0
      %p286 = por %p284, %p285
      %p287 = scmp.ne.s32.totalorder %s273, %s274
      %p288 = scmp.eq.s32.totalorder %s33, 1
      %p289 = por %p287, %p288
      %p291 = scmp.ne.s32.totalorder %s274, %s290
      %p292 = scmp.eq.s32.totalorder %s33, 0
      %p293 = por %p291, %p292
      %p294 = scmp.le.s32.totalorder 1, %s27
      %p295 = scmp.lt.s32.totalorder %s27, 3
      %p296 = pnand %p294, %p295
      %p297 = pneg %p296
      // Predicated region
      $region9: #{tpu_custom_call.1} parent=5 // pred_check
        _
      $region10: #{tpu_custom_call.1} parent=5 // pred_check_branch
        %299 = sbr.rel (%p296) target = $region12
      $region11: #{tpu_custom_call.1} parent=5 // pred_region
        %s300 = ssub.s32 %s27, 1
        // Predicated region
        $region13: #{tpu_custom_call.1} parent=11 // pred_check
          %p301 = pneg %p153
        $region14: #{tpu_custom_call.1} parent=11 // pred_check_branch
          %303 = sbr.rel (%p301) target = $region16
        $region15: #{tpu_custom_call.1} parent=11 // pred_region
          %s305 = ssub.s32 3072, 3072
          %306 = vsyncadd [#allocation13], %s305
          %s307 = sshll.u32 [#allocation12], 4
          %s308 = int_to_ptr.vmem [resolvable:$true] %s307
          %313 = dma.hbm_to_vmem [thread:$0]  %s3, 3072, %s308, [#allocation13], 192, 192, 12
        $region16: #{tpu_custom_call.1} parent=11 // pred_fallthru
          _
        // Predicated region
        $region17: #{tpu_custom_call.1} parent=11 // pred_check
          %p314 = pneg %p174
        $region18: #{tpu_custom_call.1} parent=11 // pred_check_branch
          %316 = sbr.rel (%p314) target = $region20
        $region19: #{tpu_custom_call.1} parent=11 // pred_region
          %s318 = ssub.s32 48, 48
          %319 = vsyncadd [#allocation13], %s318
          %s321 = sshll.u32 [#allocation14], 4
          %s322 = int_to_ptr.vmem [resolvable:$true] %s321
          %324 = dma.hbm_to_vmem [thread:$0]  %s4, 48, %s322, [#allocation13]
        $region20: #{tpu_custom_call.1} parent=11 // pred_fallthru
          _
        // Predicated region
        $region21: #{tpu_custom_call.1} parent=11 // pred_check
          %p325 = pneg %p195
        $region22: #{tpu_custom_call.1} parent=11 // pred_check_branch
          %327 = sbr.rel (%p325) target = $region24
        $region23: #{tpu_custom_call.1} parent=11 // pred_region
          %s329 = ssub.s32 1024, 1024
          %330 = vsyncadd [#allocation16], %s329
          %s331 = sshll.u32 [#allocation15], 4
          %s332 = int_to_ptr.vmem [resolvable:$true] %s331
          %337 = dma.hbm_to_vmem [thread:$0]  %s5, 1024, %s332, [#allocation16], 64, 64, 4
        $region24: #{tpu_custom_call.1} parent=11 // pred_fallthru
          _
        // Predicated region
        $region25: #{tpu_custom_call.1} parent=11 // pred_check
          %p338 = pneg %p216
        $region26: #{tpu_custom_call.1} parent=11 // pred_check_branch
          %340 = sbr.rel (%p338) target = $region28
        $region27: #{tpu_custom_call.1} parent=11 // pred_region
          %s342 = ssub.s32 16, 16
          %343 = vsyncadd [#allocation16], %s342
          %s345 = sshll.u32 [#allocation17], 4
          %s346 = int_to_ptr.vmem [resolvable:$true] %s345
          %348 = dma.hbm_to_vmem [thread:$0]  %s6, 16, %s346, [#allocation16]
        $region28: #{tpu_custom_call.1} parent=11 // pred_fallthru
          _
        // Predicated region
        $region29: #{tpu_custom_call.1} parent=11 // pred_check
          %p349 = pneg %p237
        $region30: #{tpu_custom_call.1} parent=11 // pred_check_branch
          %351 = sbr.rel (%p349) target = $region32
        $region31: #{tpu_custom_call.1} parent=11 // pred_region
          %s353 = ssub.s32 16, 16
          %354 = vsyncadd [#allocation19], %s353
          %s356 = sshll.u32 [#allocation18], 4
          %s357 = int_to_ptr.vmem [resolvable:$true] %s356
          %359 = dma.hbm_to_vmem [thread:$0]  %s7, 16, %s357, [#allocation19]
        $region32: #{tpu_custom_call.1} parent=11 // pred_fallthru
          _
        // Predicated region
        $region33: #{tpu_custom_call.1} parent=11 // pred_check
          %p360 = pneg %p258
        $region34: #{tpu_custom_call.1} parent=11 // pred_check_branch
          %362 = sbr.rel (%p360) target = $region36
        $region35: #{tpu_custom_call.1} parent=11 // pred_region
          %s364 = ssub.s32 16, 16
          %365 = vsyncadd [#allocation19], %s364
          %s367 = sshll.u32 [#allocation20], 4
          %s368 = int_to_ptr.vmem [resolvable:$true] %s367
          %370 = dma.hbm_to_vmem [thread:$0]  %s8, 16, %s368, [#allocation19]
        $region36: #{tpu_custom_call.1} parent=11 // pred_fallthru
          _
      $region12: #{tpu_custom_call.1} parent=5 // pred_fallthru
        _
      %p371 = scmp.lt.s32.totalorder %s27, 2
      // Predicated region
      $region37: #{tpu_custom_call.1} parent=5 // pred_check
        %p372 = pneg %p371
      $region38: #{tpu_custom_call.1} parent=5 // pred_check_branch
        %374 = sbr.rel (%p372) target = $region40
      $region39: #{tpu_custom_call.1} parent=5 // pred_region
        // Predicated region
        $region41: #{tpu_custom_call.1} parent=39 // pred_check
          %p375 = pneg %p68
        $region42: #{tpu_custom_call.1} parent=39 // pred_check_branch
          %377 = sbr.rel (%p375) target = $region44
        $region43: #{tpu_custom_call.1} parent=39 // pred_region
          %s378 = sand.u32 %s58, 1
          %s379 = scalar_lea.sflag [#allocation7], %s378
          %s380 = sand.u32 %s58, 1
          %s381 = smul.addr %s380, 8
          %s382 = scalar_lea.vmem [#allocation6], %s381
          %s384 = ssub.s32 128, 128
          %385 = vsyncadd %s379, %s384
          %s386 = sadd.s32 %s35, %s34
          %s387 = smul.addr %s386, 128
          %s388 = scalar_lea.hbm %s0, %s387
          %s390 = sshll.u32 %s382, 4
          %s391 = int_to_ptr.vmem [resolvable:$true] %s390
          %393 = dma.hbm_to_vmem [thread:$0]  %s388, 128, %s391, %s379
        $region44: #{tpu_custom_call.1} parent=39 // pred_fallthru
          _
        // Predicated region
        $region45: #{tpu_custom_call.1} parent=39 // pred_check
          %p394 = pneg %p96
        $region46: #{tpu_custom_call.1} parent=39 // pred_check_branch
          %396 = sbr.rel (%p394) target = $region48
        $region47: #{tpu_custom_call.1} parent=39 // pred_region
          %s397 = sand.u32 %s27, 1
          %s398 = scalar_lea.sflag [#allocation10], %s397
          %s399 = sand.u32 %s86, 1
          %s400 = smul.addr %s399, 8
          %s401 = scalar_lea.vmem [#allocation9], %s400
          %s403 = ssub.s32 128, 128
          %404 = vsyncadd %s398, %s403
          %s405 = sadd.s32 %s36, %s34
          %s406 = smul.addr %s405, 128
          %s407 = scalar_lea.hbm %s1, %s406
          %s409 = sshll.u32 %s401, 4
          %s410 = int_to_ptr.vmem [resolvable:$true] %s409
          %412 = dma.hbm_to_vmem [thread:$0]  %s407, 128, %s410, %s398
        $region48: #{tpu_custom_call.1} parent=39 // pred_fallthru
          _
        // Predicated region
        $region49: #{tpu_custom_call.1} parent=39 // pred_check
          %p413 = pneg %p126
        $region50: #{tpu_custom_call.1} parent=39 // pred_check_branch
          %415 = sbr.rel (%p413) target = $region52
        $region51: #{tpu_custom_call.1} parent=39 // pred_region
          %s416 = sand.u32 %s27, 1
          %s417 = scalar_lea.sflag [#allocation10], %s416
          %s418 = sand.u32 %s116, 1
          %s419 = smul.addr %s418, 8
          %s420 = scalar_lea.vmem [#allocation11], %s419
          %s422 = ssub.s32 128, 128
          %423 = vsyncadd %s417, %s422
          %s424 = sadd.s32 %s36, %s35
          %s425 = sadd.s32 %s424, %s34
          %s426 = smul.addr %s425, 128
          %s427 = scalar_lea.hbm %s2, %s426
          %s429 = sshll.u32 %s420, 4
          %s430 = int_to_ptr.vmem [resolvable:$true] %s429
          %432 = dma.hbm_to_vmem [thread:$0]  %s427, 128, %s430, %s417
        $region52: #{tpu_custom_call.1} parent=39 // pred_fallthru
          _
      $region40: #{tpu_custom_call.1} parent=5 // pred_fallthru
        _
      %p433 = scmp.le.s32.totalorder 1, %s27
      %p434 = scmp.lt.s32.totalorder %s27, 3
      %p435 = pnand %p433, %p434
      %p436 = pneg %p435
      // Predicated region
      $region53: #{tpu_custom_call.1} parent=5 // pred_check
        _
      $region54: #{tpu_custom_call.1} parent=5 // pred_check_branch
        %438 = sbr.rel (%p435) target = $region56
      $region55: #{tpu_custom_call.1} parent=5 // pred_region
        %s439 = ssub.s32 %s27, 1
        %s440 = sand.u32 %s61, 1
        %s441 = scalar_lea.sflag [#allocation7], %s440
        %s442 = sand.u32 %s61, 1
        %s443 = smul.addr %s442, 8
        %s444 = scalar_lea.vmem [#allocation6], %s443
        // Predicated region
        $region57: #{tpu_custom_call.1} parent=55 // pred_check
          %p445 = pneg %p74
        $region58: #{tpu_custom_call.1} parent=55 // pred_check_branch
          %447 = sbr.rel (%p445) target = $region60
        $region59: #{tpu_custom_call.1} parent=55 // pred_region
          %448 = dma.done %s441, 128
        $region60: #{tpu_custom_call.1} parent=55 // pred_fallthru
          _
        %s449 = sand.u32 %s32, 1
        %s450 = scalar_lea.sflag [#allocation10], %s449
        %s451 = sand.u32 %s89, 1
        %s452 = smul.addr %s451, 8
        %s453 = scalar_lea.vmem [#allocation9], %s452
        // Predicated region
        $region61: #{tpu_custom_call.1} parent=55 // pred_check
          %p454 = pneg %p102
        $region62: #{tpu_custom_call.1} parent=55 // pred_check_branch
          %456 = sbr.rel (%p454) target = $region64
        $region63: #{tpu_custom_call.1} parent=55 // pred_region
          %457 = dma.done %s450, 128
        $region64: #{tpu_custom_call.1} parent=55 // pred_fallthru
          _
        %s458 = sand.u32 %s32, 1
        %s459 = scalar_lea.sflag [#allocation10], %s458
        %s460 = sand.u32 %s119, 1
        %s461 = smul.addr %s460, 8
        %s462 = scalar_lea.vmem [#allocation11], %s461
        // Predicated region
        $region65: #{tpu_custom_call.1} parent=55 // pred_check
          %p463 = pneg %p132
        $region66: #{tpu_custom_call.1} parent=55 // pred_check_branch
          %465 = sbr.rel (%p463) target = $region68
        $region67: #{tpu_custom_call.1} parent=55 // pred_region
          %466 = dma.done %s459, 128
        $region68: #{tpu_custom_call.1} parent=55 // pred_fallthru
          _
        // Predicated region
        $region69: #{tpu_custom_call.1} parent=55 // pred_check
          %p467 = pneg %p153
        $region70: #{tpu_custom_call.1} parent=55 // pred_check_branch
          %469 = sbr.rel (%p467) target = $region72
        $region71: #{tpu_custom_call.1} parent=55 // pred_region
          %470 = dma.done [#allocation13], 3072
        $region72: #{tpu_custom_call.1} parent=55 // pred_fallthru
          _
        // Predicated region
        $region73: #{tpu_custom_call.1} parent=55 // pred_check
          %p471 = pneg %p174
        $region74: #{tpu_custom_call.1} parent=55 // pred_check_branch
          %473 = sbr.rel (%p471) target = $region76
        $region75: #{tpu_custom_call.1} parent=55 // pred_region
          %474 = dma.done [#allocation13], 48
        $region76: #{tpu_custom_call.1} parent=55 // pred_fallthru
          _
        // Predicated region
        $region77: #{tpu_custom_call.1} parent=55 // pred_check
          %p475 = pneg %p195
        $region78: #{tpu_custom_call.1} parent=55 // pred_check_branch
          %477 = sbr.rel (%p475) target = $region80
        $region79: #{tpu_custom_call.1} parent=55 // pred_region
          %478 = dma.done [#allocation16], 1024
        $region80: #{tpu_custom_call.1} parent=55 // pred_fallthru
          _
        // Predicated region
        $region81: #{tpu_custom_call.1} parent=55 // pred_check
          %p479 = pneg %p216
        $region82: #{tpu_custom_call.1} parent=55 // pred_check_branch
          %481 = sbr.rel (%p479) target = $region84
        $region83: #{tpu_custom_call.1} parent=55 // pred_region
          %482 = dma.done [#allocation16], 16
        $region84: #{tpu_custom_call.1} parent=55 // pred_fallthru
          _
        // Predicated region
        $region85: #{tpu_custom_call.1} parent=55 // pred_check
          %p483 = pneg %p237
        $region86: #{tpu_custom_call.1} parent=55 // pred_check_branch
          %485 = sbr.rel (%p483) target = $region88
        $region87: #{tpu_custom_call.1} parent=55 // pred_region
          %486 = dma.done [#allocation19], 16
        $region88: #{tpu_custom_call.1} parent=55 // pred_fallthru
          _
        // Predicated region
        $region89: #{tpu_custom_call.1} parent=55 // pred_check
          %p487 = pneg %p258
        $region90: #{tpu_custom_call.1} parent=55 // pred_check_branch
          %489 = sbr.rel (%p487) target = $region92
        $region91: #{tpu_custom_call.1} parent=55 // pred_region
          %490 = dma.done [#allocation19], 16
        $region92: #{tpu_custom_call.1} parent=55 // pred_fallthru
          _
        %s491 = sand.u32 %s61, 1
        %s492 = scalar_lea.sflag [#allocation7], %s491
        %s493 = sand.u32 %s61, 1
        %s494 = smul.addr %s493, 8
        %s495 = scalar_lea.vmem [#allocation6], %s494
        %p496 = pneg %p74
        %p497 = pneg %p71
        %s498 = sand.u32 %s32, 1
        %s499 = scalar_lea.sflag [#allocation10], %s498
        %s500 = sand.u32 %s89, 1
        %s501 = smul.addr %s500, 8
        %s502 = scalar_lea.vmem [#allocation9], %s501
        %p503 = pneg %p102
        %p504 = pneg %p99
        %s505 = sand.u32 %s32, 1
        %s506 = scalar_lea.sflag [#allocation10], %s505
        %s507 = sand.u32 %s119, 1
        %s508 = smul.addr %s507, 8
        %s509 = scalar_lea.vmem [#allocation11], %s508
        %p510 = pneg %p132
        %p511 = pneg %p129
        %p512 = pneg %p153
        %p513 = pneg %p150
        %p514 = pneg %p174
        %p515 = pneg %p171
        %p516 = pneg %p195
        %p517 = pneg %p192
        %p518 = pneg %p216
        %p519 = pneg %p213
        %p520 = pneg %p237
        %p521 = pneg %p234
        %p522 = pneg %p258
        %p523 = pneg %p255
        %p524 = pneg %p286
        %p525 = pneg %p283
        %s526 = sand.u32 %s273, 1
        %s527 = scalar_lea.sflag [#allocation8], %s526
        %s528 = sand.u32 %s273, 1
        %s529 = smul.addr %s528, 8
        %s530 = scalar_lea.vmem [#allocation21], %s529
        %p532 = scmp.eq.s32.totalorder %s39, 0
        // Predicated region
        $region93: #{tpu_custom_call.1} parent=55 // pred_check
          %p533 = pneg %p532
        $region94: #{tpu_custom_call.1} parent=55 // pred_check_branch
          %535 = sbr.rel (%p533) target = $region96
        $region95: #{tpu_custom_call.1} parent=55 // pred_region
          %v536 = vld [vmem:[%s444] sm:$0xff]
          %v537 = vpack.c.bf16 %v536, %v536
          %v538 = vld [vmem:[#allocation12] sm:$0xf]
          %v539 = vld [vmem:[#allocation12 + $0xc] sm:$0xf]
          %v540 = vld [vmem:[#allocation12 + $0x18] sm:$0xf]
          %v541 = vld [vmem:[#allocation12 + $0x24] sm:$0xf]
          %v542 = vld [vmem:[#allocation12 + $0x30] sm:$0xf]
          %v543 = vld [vmem:[#allocation12 + $0x3c] sm:$0xf]
          %v544 = vld [vmem:[#allocation12 + $0x48] sm:$0xf]
          %v545 = vld [vmem:[#allocation12 + $0x54] sm:$0xf]
          %v546 = vld [vmem:[#allocation12 + $0x60] sm:$0xf]
          %v547 = vld [vmem:[#allocation12 + $0x6c] sm:$0xf]
          %v548 = vld [vmem:[#allocation12 + $0x78] sm:$0xf]
          %v549 = vld [vmem:[#allocation12 + $0x84] sm:$0xf]
          %v550 = vld [vmem:[#allocation12 + $0x90] sm:$0xf]
          %v551 = vld [vmem:[#allocation12 + $0x9c] sm:$0xf]
          %v552 = vld [vmem:[#allocation12 + $0xa8] sm:$0xf]
          %v553 = vld [vmem:[#allocation12 + $0xb4] sm:$0xf]
          %v554 = vld [vmem:[#allocation14] sm:$0x1]
          %v556 = vlaneseq
          %v557 = vshrl.u32 %v556, 7
          %v558 = vsub.s32 0, %v557
          %v559 = vrot.slane %v554, %v558
          %v577 = vunpack.c.l.b16 %v538
          %v578 = vunpack.c.l.b16 %v539
          %v579 = vunpack.c.l.b16 %v540
          %v580 = vunpack.c.l.b16 %v541
          %v581 = vunpack.c.l.b16 %v542
          %v582 = vunpack.c.l.b16 %v543
          %v583 = vunpack.c.l.b16 %v544
          %v584 = vunpack.c.l.b16 %v545
          %v585 = vunpack.c.l.b16 %v546
          %v586 = vunpack.c.l.b16 %v547
          %v587 = vunpack.c.l.b16 %v548
          %v588 = vunpack.c.l.b16 %v549
          %v589 = vunpack.c.l.b16 %v550
          %v590 = vunpack.c.l.b16 %v551
          %v591 = vunpack.c.l.b16 %v552
          %v592 = vunpack.c.l.b16 %v553
          %v593 = vpack.c.b16 %v578, %v577
          %v594 = vpack.c.b16 %v580, %v579
          %v595 = vpack.c.b16 %v582, %v581
          %v596 = vpack.c.b16 %v584, %v583
          %v597 = vpack.c.b16 %v586, %v585
          %v598 = vpack.c.b16 %v588, %v587
          %v599 = vpack.c.b16 %v590, %v589
          %v600 = vpack.c.b16 %v592, %v591
          %609 = vmatprep.subr.bf16.mxu0 0
          %610 = vmatpush1.bf16.msra.mxu0 %v593
          %611 = vmatprep.subr.bf16.mxu0 0
          %612 = vmatpush1.bf16.msra.mxu0 %v594
          %613 = vmatprep.subr.bf16.mxu0 0
          %614 = vmatpush1.bf16.msra.mxu0 %v595
          %615 = vmatprep.subr.bf16.mxu0 0
          %616 = vmatpush1.bf16.msra.mxu0 %v596
          %617 = vmatprep.subr.bf16.mxu0 0
          %618 = vmatpush1.bf16.msra.mxu0 %v597
          %619 = vmatprep.subr.bf16.mxu0 0
          %620 = vmatpush1.bf16.msra.mxu0 %v598
          %621 = vmatprep.subr.bf16.mxu0 0
          %622 = vmatpush1.bf16.msra.mxu0 %v599
          %623 = vmatprep.subr.bf16.mxu0 0
          %624 = vmatpush1.bf16.msra.mxu0 %v600
          %625 = vmatprep.subr.bf16.mxu0 0
          %626 = vmatpush1.bf16.msra.mxu0 0
          %627 = vmatprep.subr.bf16.mxu0 0
          %628 = vmatpush1.bf16.msra.mxu0 0
          %629 = vmatprep.subr.bf16.mxu0 0
          %630 = vmatpush1.bf16.msra.mxu0 0
          %631 = vmatprep.subr.bf16.mxu0 0
          %632 = vmatpush1.bf16.msra.mxu0 0
          %633 = vmatprep.subr.bf16.mxu0 0
          %634 = vmatpush1.bf16.msra.mxu0 0
          %635 = vmatprep.subr.bf16.mxu0 0
          %636 = vmatpush1.bf16.msra.mxu0 0
          %637 = vmatprep.subr.bf16.mxu0 0
          %638 = vmatpush1.bf16.msra.mxu0 0
          %639 = vmatprep.subr.bf16.mxu0 0
          %640 = vmatpush1.bf16.msra.mxu0 0
          %641 = vmatprep.mubr.bf16.mxu0 0
          %642 = vmatmul.mubr.bf16.gmra.mrb[0].mxu0 %v537
          %v643 = vpop.f32.mrb[0].mxu0
          %v644 = vadd.f32 %v559, %v643
          %v645 = vpop.f32.mrb[0].mxu0
          %v646 = vpop.f32.mrb[0].mxu0
          %v647 = vpop.f32.mrb[0].mxu0
          %648 = vdwg.mxu0
          %v649 = vpack.c.bf16 %v644, %v644
          %650 = vst [vmem:[#allocation2] sm:$0xf] %v649
          %vm651 = vcmask 7168
          %652 = vst.msk [vmem:[#allocation3] sm:$0xff] %vm651, -inf
          %653 = vst.msk [vmem:[#allocation4] sm:$0xff] %vm651, 0.0
          %654 = vst [vmem:[#allocation5] sm:$0xff] 0.0
        $region96: #{tpu_custom_call.1} parent=55 // pred_fallthru
          _
        %v655 = vld [vmem:[%s453] sm:$0xff]
        %v656 = vpack.c.bf16 %v655, %v655
        %v657 = vld [vmem:[#allocation12 + $0x4] sm:$0xff]
        %v658 = vld [vmem:[#allocation12 + $0x10] sm:$0xff]
        %v659 = vld [vmem:[#allocation12 + $0x1c] sm:$0xff]
        %v660 = vld [vmem:[#allocation12 + $0x28] sm:$0xff]
        %v661 = vld [vmem:[#allocation12 + $0x34] sm:$0xff]
        %v662 = vld [vmem:[#allocation12 + $0x40] sm:$0xff]
        %v663 = vld [vmem:[#allocation12 + $0x4c] sm:$0xff]
        %v664 = vld [vmem:[#allocation12 + $0x58] sm:$0xff]
        %v665 = vld [vmem:[#allocation12 + $0x64] sm:$0xff]
        %v666 = vld [vmem:[#allocation12 + $0x70] sm:$0xff]
        %v667 = vld [vmem:[#allocation12 + $0x7c] sm:$0xff]
        %v668 = vld [vmem:[#allocation12 + $0x88] sm:$0xff]
        %v669 = vld [vmem:[#allocation12 + $0x94] sm:$0xff]
        %v670 = vld [vmem:[#allocation12 + $0xa0] sm:$0xff]
        %v671 = vld [vmem:[#allocation12 + $0xac] sm:$0xff]
        %v672 = vld [vmem:[#allocation12 + $0xb8] sm:$0xff]
        %v673 = vld [vmem:[#allocation14 + $0x1] sm:$0x3]
        %v675 = vlaneseq
        %v676 = vshrl.u32 %v675, 7
        %v677 = vsub.s32 0, %v676
        %v678 = vrot.slane %v673, %v677
        %v679 = vlaneseq
        %v680 = vshrl.u32 %v679, 7
        %v681 = vsub.s32 1, %v680
        %v682 = vrot.slane %v673, %v681
        %v701 = vunpack.c.l.b16 %v657
        %v702 = vunpack.c.h.b16 %v657
        %v703 = vunpack.c.l.b16 %v658
        %v704 = vunpack.c.h.b16 %v658
        %v705 = vunpack.c.l.b16 %v659
        %v706 = vunpack.c.h.b16 %v659
        %v707 = vunpack.c.l.b16 %v660
        %v708 = vunpack.c.h.b16 %v660
        %v709 = vunpack.c.l.b16 %v661
        %v710 = vunpack.c.h.b16 %v661
        %v711 = vunpack.c.l.b16 %v662
        %v712 = vunpack.c.h.b16 %v662
        %v713 = vunpack.c.l.b16 %v663
        %v714 = vunpack.c.h.b16 %v663
        %v715 = vunpack.c.l.b16 %v664
        %v716 = vunpack.c.h.b16 %v664
        %v717 = vunpack.c.l.b16 %v665
        %v718 = vunpack.c.h.b16 %v665
        %v719 = vunpack.c.l.b16 %v666
        %v720 = vunpack.c.h.b16 %v666
        %v721 = vunpack.c.l.b16 %v667
        %v722 = vunpack.c.h.b16 %v667
        %v723 = vunpack.c.l.b16 %v668
        %v724 = vunpack.c.h.b16 %v668
        %v725 = vunpack.c.l.b16 %v669
        %v726 = vunpack.c.h.b16 %v669
        %v727 = vunpack.c.l.b16 %v670
        %v728 = vunpack.c.h.b16 %v670
        %v729 = vunpack.c.l.b16 %v671
        %v730 = vunpack.c.h.b16 %v671
        %v731 = vunpack.c.l.b16 %v672
        %v732 = vunpack.c.h.b16 %v672
        %v733 = vpack.c.b16 %v703, %v701
        %v734 = vpack.c.b16 %v704, %v702
        %v735 = vpack.c.b16 %v707, %v705
        %v736 = vpack.c.b16 %v708, %v706
        %v737 = vpack.c.b16 %v711, %v709
        %v738 = vpack.c.b16 %v712, %v710
        %v739 = vpack.c.b16 %v715, %v713
        %v740 = vpack.c.b16 %v716, %v714
        %v741 = vpack.c.b16 %v719, %v717
        %v742 = vpack.c.b16 %v720, %v718
        %v743 = vpack.c.b16 %v723, %v721
        %v744 = vpack.c.b16 %v724, %v722
        %v745 = vpack.c.b16 %v727, %v725
        %v746 = vpack.c.b16 %v728, %v726
        %v747 = vpack.c.b16 %v731, %v729
        %v748 = vpack.c.b16 %v732, %v730
        %765 = vmatprep.subr.bf16.mxu0 %v734
        %766 = vmatpush1.bf16.msra.mxu0 %v733
        %767 = vmatprep.subr.bf16.mxu0 %v736
        %768 = vmatpush1.bf16.msra.mxu0 %v735
        %769 = vmatprep.subr.bf16.mxu0 %v738
        %770 = vmatpush1.bf16.msra.mxu0 %v737
        %771 = vmatprep.subr.bf16.mxu0 %v740
        %772 = vmatpush1.bf16.msra.mxu0 %v739
        %773 = vmatprep.subr.bf16.mxu0 %v742
        %774 = vmatpush1.bf16.msra.mxu0 %v741
        %775 = vmatprep.subr.bf16.mxu0 %v744
        %776 = vmatpush1.bf16.msra.mxu0 %v743
        %777 = vmatprep.subr.bf16.mxu0 %v746
        %778 = vmatpush1.bf16.msra.mxu0 %v745
        %779 = vmatprep.subr.bf16.mxu0 %v748
        %780 = vmatpush1.bf16.msra.mxu0 %v747
        %781 = vmatprep.subr.bf16.mxu0 0
        %782 = vmatpush1.bf16.msra.mxu0 0
        %783 = vmatprep.subr.bf16.mxu0 0
        %784 = vmatpush1.bf16.msra.mxu0 0
        %785 = vmatprep.subr.bf16.mxu0 0
        %786 = vmatpush1.bf16.msra.mxu0 0
        %787 = vmatprep.subr.bf16.mxu0 0
        %788 = vmatpush1.bf16.msra.mxu0 0
        %789 = vmatprep.subr.bf16.mxu0 0
        %790 = vmatpush1.bf16.msra.mxu0 0
        %791 = vmatprep.subr.bf16.mxu0 0
        %792 = vmatpush1.bf16.msra.mxu0 0
        %793 = vmatprep.subr.bf16.mxu0 0
        %794 = vmatpush1.bf16.msra.mxu0 0
        %795 = vmatprep.subr.bf16.mxu0 0
        %796 = vmatpush1.bf16.msra.mxu0 0
        %797 = vmatprep.mubr.bf16.mxu0 0
        %798 = vmatmul.mubr.bf16.gmra.mrb[0].mxu0 %v656
        %v799 = vpop.f32.mrb[0].mxu0
        %v800 = vadd.f32 %v678, %v799
        %v801 = vpop.f32.mrb[0].mxu0
        %v802 = vadd.f32 %v682, %v801
        %v803 = vpop.f32.mrb[0].mxu0
        %v804 = vpop.f32.mrb[0].mxu0
        %805 = vdwg.mxu0
        %v806 = vpack.c.bf16 %v800, %v800
        %v807 = vpack.c.bf16 %v802, %v802
        %v808 = vld [vmem:[#allocation2] sm:$0xf]
        %v809 = vld [vmem:[%s462] sm:$0xff]
        %810 = vmatprep.subr.bf16.mxu0 0
        %811 = vmatpush1.bf16.xpose.msra.mxu0 %v806
        %812 = vmatprep.subr.bf16.mxu0 0
        %813 = vmatpush1.bf16.xpose.msra.mxu0 0
        %814 = vmatprep.subr.bf16.mxu0 0
        %815 = vmatpush1.bf16.xpose.msra.mxu0 0
        %816 = vmatprep.subr.bf16.mxu0 0
        %817 = vmatpush1.bf16.xpose.msra.mxu0 0
        %818 = vmatprep.subr.bf16.mxu0 0
        %819 = vmatpush1.bf16.xpose.msra.mxu0 0
        %820 = vmatprep.subr.bf16.mxu0 0
        %821 = vmatpush1.bf16.xpose.msra.mxu0 0
        %822 = vmatprep.subr.bf16.mxu0 0
        %823 = vmatpush1.bf16.xpose.msra.mxu0 0
        %824 = vmatprep.subr.bf16.mxu0 0
        %825 = vmatpush1.bf16.xpose.msra.mxu0 0
        %826 = vmatprep.subr.bf16.mxu0 0
        %827 = vmatpush1.bf16.xpose.msra.mxu0 0
        %828 = vmatprep.subr.bf16.mxu0 0
        %829 = vmatpush1.bf16.xpose.msra.mxu0 0
        %830 = vmatprep.subr.bf16.mxu0 0
        %831 = vmatpush1.bf16.xpose.msra.mxu0 0
        %832 = vmatprep.subr.bf16.mxu0 0
        %833 = vmatpush1.bf16.xpose.msra.mxu0 0
        %834 = vmatprep.subr.bf16.mxu0 0
        %835 = vmatpush1.bf16.xpose.msra.mxu0 0
        %836 = vmatprep.subr.bf16.mxu0 0
        %837 = vmatpush1.bf16.xpose.msra.mxu0 0
        %838 = vmatprep.subr.bf16.mxu0 0
        %839 = vmatpush1.bf16.xpose.msra.mxu0 0
        %840 = vmatprep.subr.bf16.mxu0 0
        %841 = vmatpush1.bf16.xpose.msra.mxu0 0
        %842 = vmatprep.mubr.bf16.mxu0 0
        %843 = vmatmul.mubr.bf16.gmra.mrb[0].mxu0 %v808
        %v844 = vpop.f32.mrb[0].mxu0
        %v845 = vadd.f32 %v809, %v844
        %v846 = vpop.f32.mrb[0].mxu0
        %v847 = vpop.f32.mrb[0].mxu0
        %v848 = vpop.f32.mrb[0].mxu0
        %849 = vdwg.mxu0
        %v850 = vld [vmem:[#allocation3] sm:$0xff]
        %vm851 = vcmask 64512
        %v852 = vsel %vm851, %v845, -inf
        %853 = vmax.xlane.f32.xlu0 %v852
        %v854 = vpop.xlane.xlu0 %853
        %v855 = vmax.f32 %v850, %v854
        %v856 = vsub.f32 %v850, %v855
        %v857 = vmul.f32 %v856, 1.442695
        %v858 = vpow.pop %v857
        %860 = vset.pattern.permute.xlu0 0
        %861 = vperm.xlu0 %860, %v855
        %v862 = vpop.permute.xlu0 %861
        %v864 = vsub.f32 %v845, %v862
        %v865 = vmul.f32 %v864, 1.442695
        %v866 = vpow.pop %v865
        %v867 = vld [vmem:[#allocation4] sm:$0xff]
        %v868 = vmul.f32 %v858, %v867
        %v869 = vsel %vm851, %v866, 0.0
        %870 = vadd.xlane.f32.xlu0 %v869
        %v871 = vpop.xlane.xlu0 %870
        %v872 = vadd.f32 %v868, %v871
        %vm873 = vcmask 7168
        %874 = vst.msk [vmem:[#allocation4] sm:$0xff] %vm873, %v872
        %v875 = vld [vmem:[#allocation5] sm:$0xff]
        %877 = vset.pattern.permute.xlu0 0
        %878 = vperm.xlu0 %877, %v858
        %v879 = vpop.permute.xlu0 %878
        %v881 = vmul.f32 %v879, %v875
        %v882 = vpack.c.bf16 %v866, %v866
        %v884 = vsel %vm851, %v882, 0
        %vm886 = vcmask 1043456
        %v888 = vsel %vm886, %v807, 0
        %890 = vmatprep.subr.bf16.mxu0 0
        %891 = vmatpush1.bf16.msra.mxu0 %v888
        %892 = vmatprep.subr.bf16.mxu0 0
        %893 = vmatpush1.bf16.msra.mxu0 0
        %894 = vmatprep.subr.bf16.mxu0 0
        %895 = vmatpush1.bf16.msra.mxu0 0
        %896 = vmatprep.subr.bf16.mxu0 0
        %897 = vmatpush1.bf16.msra.mxu0 0
        %898 = vmatprep.subr.bf16.mxu0 0
        %899 = vmatpush1.bf16.msra.mxu0 0
        %900 = vmatprep.subr.bf16.mxu0 0
        %901 = vmatpush1.bf16.msra.mxu0 0
        %902 = vmatprep.subr.bf16.mxu0 0
        %903 = vmatpush1.bf16.msra.mxu0 0
        %904 = vmatprep.subr.bf16.mxu0 0
        %905 = vmatpush1.bf16.msra.mxu0 0
        %906 = vmatprep.subr.bf16.mxu0 0
        %907 = vmatpush1.bf16.msra.mxu0 0
        %908 = vmatprep.subr.bf16.mxu0 0
        %909 = vmatpush1.bf16.msra.mxu0 0
        %910 = vmatprep.subr.bf16.mxu0 0
        %911 = vmatpush1.bf16.msra.mxu0 0
        %912 = vmatprep.subr.bf16.mxu0 0
        %913 = vmatpush1.bf16.msra.mxu0 0
        %914 = vmatprep.subr.bf16.mxu0 0
        %915 = vmatpush1.bf16.msra.mxu0 0
        %916 = vmatprep.subr.bf16.mxu0 0
        %917 = vmatpush1.bf16.msra.mxu0 0
        %918 = vmatprep.subr.bf16.mxu0 0
        %919 = vmatpush1.bf16.msra.mxu0 0
        %920 = vmatprep.subr.bf16.mxu0 0
        %921 = vmatpush1.bf16.msra.mxu0 0
        %922 = vmatprep.mubr.bf16.mxu0 0
        %923 = vmatmul.mubr.bf16.gmra.mrb[0].mxu0 %v884
        %v924 = vpop.f32.mrb[0].mxu0
        %v925 = vadd.f32 0.0, %v924
        %v926 = vpop.f32.mrb[0].mxu0
        %v927 = vpop.f32.mrb[0].mxu0
        %v928 = vpop.f32.mrb[0].mxu0
        %929 = vdwg.mxu0
        %v930 = vadd.f32 %v881, %v925
        %931 = vst [vmem:[#allocation5] sm:$0xff] %v930
        %932 = vst.msk [vmem:[#allocation3] sm:$0xff] %vm873, %v855
        // Predicated region
        $region97: #{tpu_custom_call.1} parent=55 // pred_check
          %p933 = pneg %p532
        $region98: #{tpu_custom_call.1} parent=55 // pred_check_branch
          %935 = sbr.rel (%p933) target = $region100
        $region99: #{tpu_custom_call.1} parent=55 // pred_region
          %v936 = vld [vmem:[#allocation5] sm:$0xff]
          %v937 = vld [vmem:[#allocation4] sm:$0xff]
          %939 = vset.pattern.permute.xlu0 0
          %940 = vperm.xlu0 %939, %v937
          %v941 = vpop.permute.xlu0 %940
          %v943 = vrcp.pop %v941
          %v944 = vmul.f32 %v936, %v943
          %v945 = vld [vmem:[%s444] sm:$0xff]
          %v946 = vadd.f32 %v945, %v944
          %v947 = vpack.c.bf16 %v946, %v946
          %v948 = vld [vmem:[#allocation15] sm:$0xf]
          %v949 = vld [vmem:[#allocation15 + $0x4] sm:$0xf]
          %v950 = vld [vmem:[#allocation15 + $0x8] sm:$0xf]
          %v951 = vld [vmem:[#allocation15 + $0xc] sm:$0xf]
          %v952 = vld [vmem:[#allocation15 + $0x10] sm:$0xf]
          %v953 = vld [vmem:[#allocation15 + $0x14] sm:$0xf]
          %v954 = vld [vmem:[#allocation15 + $0x18] sm:$0xf]
          %v955 = vld [vmem:[#allocation15 + $0x1c] sm:$0xf]
          %v956 = vld [vmem:[#allocation15 + $0x20] sm:$0xf]
          %v957 = vld [vmem:[#allocation15 + $0x24] sm:$0xf]
          %v958 = vld [vmem:[#allocation15 + $0x28] sm:$0xf]
          %v959 = vld [vmem:[#allocation15 + $0x2c] sm:$0xf]
          %v960 = vld [vmem:[#allocation15 + $0x30] sm:$0xf]
          %v961 = vld [vmem:[#allocation15 + $0x34] sm:$0xf]
          %v962 = vld [vmem:[#allocation15 + $0x38] sm:$0xf]
          %v963 = vld [vmem:[#allocation15 + $0x3c] sm:$0xf]
          %v964 = vld [vmem:[#allocation17] sm:$0x1]
          %v966 = vlaneseq
          %v967 = vshrl.u32 %v966, 7
          %v968 = vsub.s32 0, %v967
          %v969 = vrot.slane %v964, %v968
          %v987 = vunpack.c.l.b16 %v948
          %v988 = vunpack.c.l.b16 %v949
          %v989 = vunpack.c.l.b16 %v950
          %v990 = vunpack.c.l.b16 %v951
          %v991 = vunpack.c.l.b16 %v952
          %v992 = vunpack.c.l.b16 %v953
          %v993 = vunpack.c.l.b16 %v954
          %v994 = vunpack.c.l.b16 %v955
          %v995 = vunpack.c.l.b16 %v956
          %v996 = vunpack.c.l.b16 %v957
          %v997 = vunpack.c.l.b16 %v958
          %v998 = vunpack.c.l.b16 %v959
          %v999 = vunpack.c.l.b16 %v960
          %v1000 = vunpack.c.l.b16 %v961
          %v1001 = vunpack.c.l.b16 %v962
          %v1002 = vunpack.c.l.b16 %v963
          %v1003 = vpack.c.b16 %v988, %v987
          %v1004 = vpack.c.b16 %v990, %v989
          %v1005 = vpack.c.b16 %v992, %v991
          %v1006 = vpack.c.b16 %v994, %v993
          %v1007 = vpack.c.b16 %v996, %v995
          %v1008 = vpack.c.b16 %v998, %v997
          %v1009 = vpack.c.b16 %v1000, %v999
          %v1010 = vpack.c.b16 %v1002, %v1001
          %1019 = vmatprep.subr.bf16.mxu0 0
          %1020 = vmatpush1.bf16.msra.mxu0 %v1003
          %1021 = vmatprep.subr.bf16.mxu0 0
          %1022 = vmatpush1.bf16.msra.mxu0 %v1004
          %1023 = vmatprep.subr.bf16.mxu0 0
          %1024 = vmatpush1.bf16.msra.mxu0 %v1005
          %1025 = vmatprep.subr.bf16.mxu0 0
          %1026 = vmatpush1.bf16.msra.mxu0 %v1006
          %1027 = vmatprep.subr.bf16.mxu0 0
          %1028 = vmatpush1.bf16.msra.mxu0 %v1007
          %1029 = vmatprep.subr.bf16.mxu0 0
          %1030 = vmatpush1.bf16.msra.mxu0 %v1008
          %1031 = vmatprep.subr.bf16.mxu0 0
          %1032 = vmatpush1.bf16.msra.mxu0 %v1009
          %1033 = vmatprep.subr.bf16.mxu0 0
          %1034 = vmatpush1.bf16.msra.mxu0 %v1010
          %1035 = vmatprep.subr.bf16.mxu0 0
          %1036 = vmatpush1.bf16.msra.mxu0 0
          %1037 = vmatprep.subr.bf16.mxu0 0
          %1038 = vmatpush1.bf16.msra.mxu0 0
          %1039 = vmatprep.subr.bf16.mxu0 0
          %1040 = vmatpush1.bf16.msra.mxu0 0
          %1041 = vmatprep.subr.bf16.mxu0 0
          %1042 = vmatpush1.bf16.msra.mxu0 0
          %1043 = vmatprep.subr.bf16.mxu0 0
          %1044 = vmatpush1.bf16.msra.mxu0 0
          %1045 = vmatprep.subr.bf16.mxu0 0
          %1046 = vmatpush1.bf16.msra.mxu0 0
          %1047 = vmatprep.subr.bf16.mxu0 0
          %1048 = vmatpush1.bf16.msra.mxu0 0
          %1049 = vmatprep.subr.bf16.mxu0 0
          %1050 = vmatpush1.bf16.msra.mxu0 0
          %1051 = vmatprep.mubr.bf16.mxu0 0
          %1052 = vmatmul.mubr.bf16.gmra.mrb[0].mxu0 %v947
          %v1053 = vpop.f32.mrb[0].mxu0
          %v1054 = vadd.f32 %v969, %v1053
          %v1055 = vpop.f32.mrb[0].mxu0
          %v1056 = vpop.f32.mrb[0].mxu0
          %v1057 = vpop.f32.mrb[0].mxu0
          %1058 = vdwg.mxu0
          %v1059 = vld [vmem:[#allocation18] sm:$0x1]
          %v1060 = vld [vmem:[#allocation20] sm:$0x1]
          %v1061 = vlaneseq
          %v1062 = vand.u32 %v1061, 127
          %vm1063 = vcmp.lt.s32.totalorder %v1062, 32
          %1064 = vadd.xlane.f32.xlu0 %v1054
          %v1065 = vpop.xlane.xlu0 %1064
          %v1066 = vmul.f32 %v1065, 0.03125
          %v1067 = vsub.f32 %v1054, %v1066
          %v1068 = vsel %vm1063, %v1067, 0.0
          %v1069 = vmul.f32 %v1068, %v1068
          %1070 = vadd.xlane.f32.xlu0 %v1069
          %v1071 = vpop.xlane.xlu0 %1070
          %v1072 = vmul.f32 %v1071, 0.03125
          %v1073 = vadd.f32 %v1072, 1e-05
          %v1074 = vrsqrt.pop %v1073
          %v1075 = vmul.f32 %v1067, %v1074
          %v1077 = vlaneseq
          %v1078 = vshrl.u32 %v1077, 7
          %v1079 = vsub.s32 0, %v1078
          %v1080 = vrot.slane %v1059, %v1079
          %v1082 = vmul.f32 %v1075, %v1080
          %v1084 = vlaneseq
          %v1085 = vshrl.u32 %v1084, 7
          %v1086 = vsub.s32 0, %v1085
          %v1087 = vrot.slane %v1060, %v1086
          %v1089 = vadd.f32 %v1082, %v1087
          %1090 = vst [vmem:[%s530] sm:$0xff] %v1089
        $region100: #{tpu_custom_call.1} parent=55 // pred_fallthru
          _
        %s1091 = sand.u32 %s273, 1
        %s1092 = scalar_lea.sflag [#allocation8], %s1091
        %s1093 = sand.u32 %s273, 1
        %s1094 = smul.addr %s1093, 8
        %s1095 = scalar_lea.vmem [#allocation21], %s1094
        // Predicated region
        $region101: #{tpu_custom_call.1} parent=55 // pred_check
          %p1096 = pneg %p283
        $region102: #{tpu_custom_call.1} parent=55 // pred_check_branch
          %1098 = sbr.rel (%p1096) target = $region104
        $region103: #{tpu_custom_call.1} parent=55 // pred_region
          %s1100 = ssub.s32 128, 128
          %1101 = vsyncadd %s1092, %s1100
          %s1102 = sadd.s32 %s38, %s37
          %s1103 = smul.addr %s1102, 128
          %s1104 = scalar_lea.hbm %s9, %s1103
          %s1106 = sshll.u32 %s1095, 4
          %s1107 = int_to_ptr.vmem [resolvable:$true] %s1106
          %1109 = dma.vmem_to_hbm [thread:$0]  %s1107, 128, %s1104, %s1092
        $region104: #{tpu_custom_call.1} parent=55 // pred_fallthru
          _
      $region56: #{tpu_custom_call.1} parent=5 // pred_fallthru
        _
      %p1110 = scmp.le.s32.totalorder 2, %s27
      // Predicated region
      $region105: #{tpu_custom_call.1} parent=5 // pred_check
        %p1111 = pneg %p1110
      $region106: #{tpu_custom_call.1} parent=5 // pred_check_branch
        %1113 = sbr.rel (%p1111) target = $region108
      $region107: #{tpu_custom_call.1} parent=5 // pred_region
        %s1114 = ssub.s32 %s27, 2
        // Predicated region
        $region109: #{tpu_custom_call.1} parent=107 // pred_check
          %p1115 = pneg %p289
        $region110: #{tpu_custom_call.1} parent=107 // pred_check_branch
          %1117 = sbr.rel (%p1115) target = $region112
        $region111: #{tpu_custom_call.1} parent=107 // pred_region
          %s1118 = sand.u32 %s274, 1
          %s1119 = scalar_lea.sflag [#allocation8], %s1118
          %s1120 = sand.u32 %s274, 1
          %s1121 = smul.addr %s1120, 8
          %s1122 = scalar_lea.vmem [#allocation21], %s1121
          %1123 = dma.done %s1119, 128
        $region112: #{tpu_custom_call.1} parent=107 // pred_fallthru
          _
      $region108: #{tpu_custom_call.1} parent=5 // pred_fallthru
        _
    $region6: #{tpu_custom_call.1} parent=1 // loop_footer
      %s31 = sadd.s32 1, %s27
    $region7: #{tpu_custom_call.1} parent=1 // loop_footer_branch
      %26 = sbr.rel target = $region3
    $region8: #{tpu_custom_call.1} parent=1 // loop_exit
      _
    %1124 = vsyncpa [#allocation7], 1
    %s1125 = scalar_lea.sflag [#allocation7], 1
    %1126 = vsyncpa %s1125, 1
    %1127 = vsyncpa [#allocation10], 1
    %s1128 = scalar_lea.sflag [#allocation10], 1
    %1129 = vsyncpa %s1128, 1
    %1130 = vsyncpa [#allocation13], 1
    %1131 = vsyncpa [#allocation16], 1
    %1132 = vsyncpa [#allocation19], 1
    %1133 = vsyncpa [#allocation8], 1
    %s1134 = scalar_lea.sflag [#allocation8], 1
    %1135 = vsyncpa %s1134, 1

</llo_original>
